<compile_context>
chip_gen: v5e
topology: v5e:2x2
jax: 0.10.0
libtpu: 0.0.40
codegen_flags: <defaults>
</compile_context>

<pallas_src>
import functools

import jax
import jax.numpy as jnp
from jax.experimental import pallas as pl
from jax.experimental.pallas import tpu as pltpu


_SELU_ALPHA = 1.6732632423543772
_SELU_SCALE = 1.0507009873554805


def _selu(v):
    neg = jnp.minimum(v, 0.0)                       # avoid exp overflow in unselected branch
    return _SELU_SCALE * jnp.where(v > 0.0, v, _SELU_ALPHA * (jnp.exp(neg) - 1.0))


def _round_up(x, m):
    return ((x + m - 1) // m) * m


# ----------------------------------------------------------------------------
# Fused kernel (one batch tile per grid step)
# ----------------------------------------------------------------------------
def _conv_matmul_relu_norm(taps, w_ref, b_ref):
    """One conv layer: im2col by lane-concat of tap slices, ONE bf16 MXU matmul
    with f32 accumulation, bias, ReLU, per-position L2 channel normalization.

    taps:  list of tap arrays, each (L_out, Bt, C_in) bf16, tap-major order.
    w_ref: (K*C_in, C_out) bf16, row index = k*C_in + c.
    b_ref: (1, C_out) f32.
    Returns (L_out, Bt, C_out) bf16 (position-leading, channels on lanes).
    """
    p = taps[0] if len(taps) == 1 else jnp.concatenate(taps, axis=-1)
    l_out, bt, kc = p.shape
    c_out = w_ref.shape[-1]
    y = jnp.dot(p.reshape(l_out * bt, kc), w_ref[...],
                preferred_element_type=jnp.float32) + b_ref[...]
    y = jnp.maximum(y, 0.0)                                       # ReLU
    ss = jnp.sum(y * y, axis=-1, keepdims=True)
    # F.normalize(p=2, dim=channel, eps=1e-12)  ==  y * rsqrt(max(ss, eps^2))
    y = y * jax.lax.rsqrt(jnp.maximum(ss, 1e-24))
    return y.reshape(l_out, bt, c_out).astype(jnp.bfloat16)       # reshape in f32, then cast


def _stride2_taps(h, kernel_size):
    """Stride-2 tap slices with NO strided loads and NO selection matmul:
    fold position pairs into a leading axis (leading-dims-only reshape), then
    take contiguous leading-dim slices.  h: (L_in, Bt, C) -> K x (L_out, Bt, C)."""
    l_in, bt, c = h.shape
    l_out = (l_in - kernel_size) // 2 + 1
    h4 = h.reshape(l_in // 2, 2, bt, c)            # leading dims only -> trivial layout
    return [h4[k // 2:k // 2 + l_out, k % 2] for k in range(kernel_size)]


def classifier_kernel(x_ref,
                      w1_ref, b1_ref, w2_ref, b2_ref, w3_ref, b3_ref,
                      w4_ref, b4_ref, w5_ref, b5_ref, w6_ref, b6_ref,
                      o_ref):
    # x_ref: (L/2, Bt, 2*C) f32 — pair-folded, position-leading; batch on sublanes,
    # (position-pair, channel) on lanes (lane-dense block, no 4->128 lane bloat).
    x = x_ref[...].astype(jnp.bfloat16)
    lh = x.shape[0]

    # conv1 (K=8, stride 2): lanes already hold (position-pair, channel), so the
    # K/2 tap-PAIR slices along the leading axis ARE the im2col pieces.
    l1 = lh - (8 // 2) + 1                                         # 22
    taps1 = [x[kp:kp + l1] for kp in range(8 // 2)]
    h = _conv_matmul_relu_norm(taps1, w1_ref, b1_ref)              # (22, Bt, 128)

    # conv2 (K=4) / conv3 (K=2), stride 2.
    h = _conv_matmul_relu_norm(_stride2_taps(h, 4), w2_ref, b2_ref)   # (10, Bt, 64)
    h = _conv_matmul_relu_norm(_stride2_taps(h, 2), w3_ref, b3_ref)   # (5, Bt, 32)

    # torch.flatten(x, 1) + lin1 as ONE matmul: lane-concat the per-position rows
    # (feature order l*C3 + c; lin1's rows were permuted to this order in pack_params).
    l3 = h.shape[0]
    h_flat = jnp.concatenate([h[i] for i in range(l3)], axis=-1)   # (Bt, 160) bf16

    h4 = _selu(jnp.dot(h_flat, w4_ref[...],
                       preferred_element_type=jnp.float32) + b4_ref[...])
    # TODO(synk): F.dropout(p=0.5) defaults to training=True (stochastic) in the
    # PyTorch module; the deterministic eval/identity path is implemented here.
    h5 = _selu(jnp.dot(h4.astype(jnp.bfloat16), w5_ref[...],
                       preferred_element_type=jnp.float32) + b5_ref[...])
    logits = jnp.dot(h5.astype(jnp.bfloat16), w6_ref[...],
                     preferred_element_type=jnp.float32) + b6_ref[...]
    o_ref[...] = logits                                            # (Bt, nb_labels)


# ----------------------------------------------------------------------------
# Wrappers
# ----------------------------------------------------------------------------
def pack_params(p):
    """One-time weight prep: flatten / transpose / permute into kernel layout."""
    f32, bf16 = jnp.float32, jnp.bfloat16

    def conv_w(w):  # torch (C_out, C_in, K) -> (K*C_in, C_out), row = k*C_in + c
        c_out, c_in, k = w.shape
        return jnp.transpose(w, (2, 1, 0)).reshape(k * c_in, c_out).astype(bf16)

    # lin1 consumes torch.flatten of the NCL conv3 output (feature = c*L3 + l);
    # the kernel produces features in (l, c) order -> permute lin1's rows.
    lin1_w = p["lin1_w"]                            # (64, 160)
    out_f, in_f = lin1_w.shape
    c3 = p["conv3_w"].shape[0]                      # 32
    l3 = in_f // c3                                 # 5
    w4 = jnp.transpose(lin1_w.reshape(out_f, c3, l3), (2, 1, 0)).reshape(in_f, out_f)

    return dict(
        w1=conv_w(p["conv1_w"]), b1=p["conv1_b"].reshape(1, -1).astype(f32),
        w2=conv_w(p["conv2_w"]), b2=p["conv2_b"].reshape(1, -1).astype(f32),
        w3=conv_w(p["conv3_w"]), b3=p["conv3_b"].reshape(1, -1).astype(f32),
        w4=w4.astype(bf16),            b4=p["lin1_b"].reshape(1, -1).astype(f32),
        w5=p["lin2_w"].T.astype(bf16), b5=p["lin2_b"].reshape(1, -1).astype(f32),
        w6=p["out_w"].T.astype(bf16),  b6=p["out_b"].reshape(1, -1).astype(f32),
    )


def classifier_forward(x_ncl, packed, *, block_batch=128, vmem_limit_bytes=None):
    """x_ncl: (N, channels, L) f32 (PyTorch NCL layout). Returns (N, nb_labels).

    block_batch: samples per grid step.  128 fits v5e's 16 MiB default scoped
    VMEM with headroom; v6e can use 256-512 with vmem_limit_bytes raised; on
    v7x keep N/block_batch >= 2 so both TensorCores get grid steps.
    """
    n, c, l = x_ncl.shape
    assert l % 2 == 0 and block_batch % 16 == 0

    # Pair-folded, position-leading layout (L/2, N, 2C): one cheap XLA transform.
    xp = jnp.transpose(x_ncl, (2, 0, 1)).reshape(l // 2, 2, n, c)
    xp = jnp.transpose(xp, (0, 2, 1, 3)).reshape(l // 2, n, 2 * c)

    # Batch tile: multiple of 16 so all in-kernel sublane merges are tile-aligned.
    bt = min(block_batch, _round_up(n, 16))
    n_pad = _round_up(n, bt)
    if n_pad != n:
        xp = jnp.pad(xp, ((0, 0), (0, n_pad - n), (0, 0)))

    weight_args = (packed["w1"], packed["b1"], packed["w2"], packed["b2"],
                   packed["w3"], packed["b3"], packed["w4"], packed["b4"],
                   packed["w5"], packed["b5"], packed["w6"], packed["b6"])
    nb_labels = packed["w6"].shape[-1]

    in_specs = [pl.BlockSpec((l // 2, bt, 2 * c), lambda i: (0, i, 0))]
    in_specs += [pl.BlockSpec(w.shape, lambda i: (0, 0)) for w in weight_args]

    cp_kwargs = {}
    if vmem_limit_bytes is not None:
        cp_kwargs["vmem_limit_bytes"] = vmem_limit_bytes

    out = pl.pallas_call(
        classifier_kernel,
        out_shape=jax.ShapeDtypeStruct((n_pad, nb_labels), jnp.float32),
        grid=(n_pad // bt,),
        in_specs=in_specs,
        out_specs=pl.BlockSpec((bt, nb_labels), lambda i: (i, 0)),
        compiler_params=pltpu.CompilerParams(
            dimension_semantics=("parallel",), **cp_kwargs),
    )(xp, *weight_args)
    return out[:n]


# ----------------------------------------------------------------------------
# Pure-JAX reference (mirrors the PyTorch module, dropout = eval/identity)
# ----------------------------------------------------------------------------
def reference_forward(x_ncl, p):
    def conv1d(x, w, b, stride):
        y = jax.lax.conv_general_dilated(
            x, w, window_strides=(stride,), padding="VALID",
            dimension_numbers=("NCH", "OIH", "NCH"))
        return y + b[None, :, None]

    def relu_norm(y):
        y = jnp.maximum(y, 0.0)
        nrm = jnp.sqrt(jnp.sum(y * y, axis=1, keepdims=True))
        return y / jnp.maximum(nrm, 1e-12)

    x = relu_norm(conv1d(x_ncl, p["conv1_w"], p["conv1_b"], 2))
    x = relu_norm(conv1d(x, p["conv2_w"], p["conv2_b"], 2))
    x = relu_norm(conv1d(x, p["conv3_w"], p["conv3_b"], 2))
    x = x.reshape(x.shape[0], -1)
    x = _selu(x @ p["lin1_w"].T + p["lin1_b"])
    x = _selu(x @ p["lin2_w"].T + p["lin2_b"])
    return x @ p["out_w"].T + p["out_b"]


# ----------------------------------------------------------------------------
# Deterministic parameter init (shapes from Classifier.__init__, torch layout)
# ----------------------------------------------------------------------------
def init_params(key, channels, nb_labels):
    ks = jax.random.split(key, 12)
    sc = 0.05
    f32 = jnp.float32
    return {
        "conv1_w": sc * jax.random.normal(ks[0], (128, channels, 8), f32),
        "conv1_b": sc * jax.random.normal(ks[1], (128,), f32),
        "conv2_w": sc * jax.random.normal(ks[2], (64, 128, 4), f32),
        "conv2_b": sc * jax.random.normal(ks[3], (64,), f32),
        "conv3_w": sc * jax.random.normal(ks[4], (32, 64, 2), f32),
        "conv3_b": sc * jax.random.normal(ks[5], (32,), f32),
        "lin1_w": sc * jax.random.normal(ks[6], (64, 160), f32),
        "lin1_b": sc * jax.random.normal(ks[7], (64,), f32),
        "lin2_w": sc * jax.random.normal(ks[8], (32, 64), f32),
        "lin2_b": sc * jax.random.normal(ks[9], (32,), f32),
        "out_w": sc * jax.random.normal(ks[10], (nb_labels, 32), f32),
        "out_b": sc * jax.random.normal(ks[11], (nb_labels,), f32),
    }


if __name__ == "__main__":
    # lin1 expects 160 = 32 * 5 in-features, which forces input length L = 50:
    # 50 -conv1(k8,s2)-> 22 -conv2(k4,s2)-> 10 -conv3(k2,s2)-> 5
    batch, channels, length, nb_labels = 2, 4, 50, 3

    key = jax.random.PRNGKey(0)
    k_x, k_p = jax.random.split(key)
    x = jax.random.normal(k_x, (batch, channels, length), jnp.float32)
    params = init_params(k_p, channels, nb_labels)
    packed = pack_params(params)                    # one-time weight prep

    fwd = jax.jit(classifier_forward)
    logits = jax.block_until_ready(fwd(x, packed))
    assert logits.shape == (batch, nb_labels)
    assert bool(jnp.all(jnp.isfinite(logits)))

    # Numerical check vs. pure-JAX reference (loose tol: bf16 MXU inputs).
    ref = jax.jit(reference_forward)(x, params)
    max_err = float(jnp.max(jnp.abs(logits - ref)))
    assert max_err < 3e-2, f"max |err| = {max_err}"

    # Also exercise batch padding + a multi-step grid (2 steps of 16) at small scale.
    x2 = jax.random.normal(jax.random.PRNGKey(1), (19, channels, length), jnp.float32)
    fwd_small_tile = jax.jit(functools.partial(classifier_forward, block_batch=16))
    logits2 = jax.block_until_ready(fwd_small_tile(x2, packed))
    ref2 = jax.jit(reference_forward)(x2, params)
    assert logits2.shape == (19, nb_labels)
    max_err2 = float(jnp.max(jnp.abs(logits2 - ref2)))
    assert max_err2 < 3e-2, f"max |err| = {max_err2}"

    print("KERNEL_OK")
</pallas_src>

<mosaic_0001>
module attributes {stable_mosaic.version = 11 : i64} {
  func.func @classifier_kernel(%arg0: i32, %arg1: memref<25x16x8xf32, #tpu.memory_space<vmem>>, %arg2: memref<32x128xbf16, #tpu.memory_space<vmem>>, %arg3: memref<1x128xf32, #tpu.memory_space<vmem>>, %arg4: memref<512x64xbf16, #tpu.memory_space<vmem>>, %arg5: memref<1x64xf32, #tpu.memory_space<vmem>>, %arg6: memref<128x32xbf16, #tpu.memory_space<vmem>>, %arg7: memref<1x32xf32, #tpu.memory_space<vmem>>, %arg8: memref<160x64xbf16, #tpu.memory_space<vmem>>, %arg9: memref<1x64xf32, #tpu.memory_space<vmem>>, %arg10: memref<64x32xbf16, #tpu.memory_space<vmem>>, %arg11: memref<1x32xf32, #tpu.memory_space<vmem>>, %arg12: memref<32x3xbf16, #tpu.memory_space<vmem>>, %arg13: memref<1x3xf32, #tpu.memory_space<vmem>>, %arg14: memref<16x3xf32, #tpu.memory_space<vmem>>) attributes {dimension_semantics = [#tpu.dimension_semantics<parallel>], iteration_bounds = array<i64: 1>, scalar_prefetch = 0 : i64, scratch_operands = 0 : i64, tpu.core_type = #tpu.core_type<tc>, window_params = [{transform_indices = @transform_0, window_bounds = array<i64: 25, 16, 8>}, {pipeline_mode = #tpu.pipeline_mode<synchronous>, transform_indices = @transform_1, window_bounds = array<i64: 32, 128>}, {pipeline_mode = #tpu.pipeline_mode<synchronous>, transform_indices = @transform_2, window_bounds = array<i64: 1, 128>}, {pipeline_mode = #tpu.pipeline_mode<synchronous>, transform_indices = @transform_3, window_bounds = array<i64: 512, 64>}, {pipeline_mode = #tpu.pipeline_mode<synchronous>, transform_indices = @transform_4, window_bounds = array<i64: 1, 64>}, {pipeline_mode = #tpu.pipeline_mode<synchronous>, transform_indices = @transform_5, window_bounds = array<i64: 128, 32>}, {pipeline_mode = #tpu.pipeline_mode<synchronous>, transform_indices = @transform_6, window_bounds = array<i64: 1, 32>}, {pipeline_mode = #tpu.pipeline_mode<synchronous>, transform_indices = @transform_7, window_bounds = array<i64: 160, 64>}, {pipeline_mode = #tpu.pipeline_mode<synchronous>, transform_indices = @transform_8, window_bounds = array<i64: 1, 64>}, {pipeline_mode = #tpu.pipeline_mode<synchronous>, transform_indices = @transform_9, window_bounds = array<i64: 64, 32>}, {pipeline_mode = #tpu.pipeline_mode<synchronous>, transform_indices = @transform_10, window_bounds = array<i64: 1, 32>}, {pipeline_mode = #tpu.pipeline_mode<synchronous>, transform_indices = @transform_11, window_bounds = array<i64: 32, 3>}, {pipeline_mode = #tpu.pipeline_mode<synchronous>, transform_indices = @transform_12, window_bounds = array<i64: 1, 3>}, {transform_indices = @transform_13, window_bounds = array<i64: 16, 3>}]} {
    %c0 = arith.constant 0 : index
    %c0_0 = arith.constant 0 : index
    %c0_1 = arith.constant 0 : index
    %0 = vector.load %arg1[%c0, %c0_0, %c0_1] : memref<25x16x8xf32, #tpu.memory_space<vmem>>, vector<25x16x8xf32>
    %1 = arith.truncf %0 : vector<25x16x8xf32> to vector<25x16x8xbf16>
    %2 = vector.extract_strided_slice %1 {offsets = [0, 0, 0], sizes = [22, 16, 8], strides = [1, 1, 1]} : vector<25x16x8xbf16> to vector<22x16x8xbf16>
    %3 = vector.extract_strided_slice %1 {offsets = [1, 0, 0], sizes = [22, 16, 8], strides = [1, 1, 1]} : vector<25x16x8xbf16> to vector<22x16x8xbf16>
    %4 = vector.extract_strided_slice %1 {offsets = [2, 0, 0], sizes = [22, 16, 8], strides = [1, 1, 1]} : vector<25x16x8xbf16> to vector<22x16x8xbf16>
    %5 = vector.extract_strided_slice %1 {offsets = [3, 0, 0], sizes = [22, 16, 8], strides = [1, 1, 1]} : vector<25x16x8xbf16> to vector<22x16x8xbf16>
    %6 = tpu.concatenate %2, %3, %4, %5 in 2 : vector<22x16x8xbf16>, vector<22x16x8xbf16>, vector<22x16x8xbf16>, vector<22x16x8xbf16> -> vector<22x16x32xbf16>
    %7 = vector.shape_cast %6 : vector<22x16x32xbf16> to vector<352x32xbf16>
    %c0_2 = arith.constant 0 : index
    %c0_3 = arith.constant 0 : index
    %8 = vector.load %arg2[%c0_2, %c0_3] : memref<32x128xbf16, #tpu.memory_space<vmem>>, vector<32x128xbf16>
    %cst = arith.constant dense<0.000000e+00> : vector<352x128xf32>
    %9 = tpu.matmul %7, %8, %cst {dimension_numbers = #tpu.dot_dimension_numbers<[1], [0], [0], [1], [0, 0, 1, 1], [], []>} : vector<352x32xbf16>, vector<32x128xbf16>, vector<352x128xf32> -> vector<352x128xf32>
    %c0_4 = arith.constant 0 : index
    %c0_5 = arith.constant 0 : index
    %10 = vector.load %arg3[%c0_4, %c0_5] : memref<1x128xf32, #tpu.memory_space<vmem>>, vector<1x128xf32>
    %11 = vector.broadcast %10 : vector<1x128xf32> to vector<352x128xf32>
    %12 = arith.addf %9, %11 : vector<352x128xf32>
    %cst_6 = arith.constant 0.000000e+00 : f32
    %13 = vector.broadcast %cst_6 : f32 to vector<352x128xf32>
    %14 = arith.maximumf %12, %13 : vector<352x128xf32>
    %15 = arith.mulf %14, %14 : vector<352x128xf32>
    %cst_7 = arith.constant dense<0.000000e+00> : vector<352xf32>
    %16 = vector.multi_reduction <add>, %15, %cst_7 [1] : vector<352x128xf32> to vector<352xf32>
    %17 = vector.shape_cast %16 : vector<352xf32> to vector<352x1xf32>
    %cst_8 = arith.constant 1.000000e-24 : f32
    %18 = vector.broadcast %cst_8 : f32 to vector<352x1xf32>
    %19 = arith.maximumf %17, %18 : vector<352x1xf32>
    %20 = math.rsqrt %19 : vector<352x1xf32>
    %21 = vector.broadcast %20 : vector<352x1xf32> to vector<352x128xf32>
    %22 = arith.mulf %14, %21 : vector<352x128xf32>
    %23 = vector.shape_cast %22 : vector<352x128xf32> to vector<22x16x128xf32>
    %24 = arith.truncf %23 : vector<22x16x128xf32> to vector<22x16x128xbf16>
    %25 = vector.shape_cast %24 : vector<22x16x128xbf16> to vector<11x2x16x128xbf16>
    %26 = vector.extract_strided_slice %25 {offsets = [0, 0, 0, 0], sizes = [10, 1, 16, 128], strides = [1, 1, 1, 1]} : vector<11x2x16x128xbf16> to vector<10x1x16x128xbf16>
    %27 = vector.shape_cast %26 : vector<10x1x16x128xbf16> to vector<10x16x128xbf16>
    %28 = vector.extract_strided_slice %25 {offsets = [0, 1, 0, 0], sizes = [10, 1, 16, 128], strides = [1, 1, 1, 1]} : vector<11x2x16x128xbf16> to vector<10x1x16x128xbf16>
    %29 = vector.shape_cast %28 : vector<10x1x16x128xbf16> to vector<10x16x128xbf16>
    %30 = vector.extract_strided_slice %25 {offsets = [1, 0, 0, 0], sizes = [10, 1, 16, 128], strides = [1, 1, 1, 1]} : vector<11x2x16x128xbf16> to vector<10x1x16x128xbf16>
    %31 = vector.shape_cast %30 : vector<10x1x16x128xbf16> to vector<10x16x128xbf16>
    %32 = vector.extract_strided_slice %25 {offsets = [1, 1, 0, 0], sizes = [10, 1, 16, 128], strides = [1, 1, 1, 1]} : vector<11x2x16x128xbf16> to vector<10x1x16x128xbf16>
    %33 = vector.shape_cast %32 : vector<10x1x16x128xbf16> to vector<10x16x128xbf16>
    %34 = tpu.concatenate %27, %29, %31, %33 in 2 : vector<10x16x128xbf16>, vector<10x16x128xbf16>, vector<10x16x128xbf16>, vector<10x16x128xbf16> -> vector<10x16x512xbf16>
    %35 = vector.shape_cast %34 : vector<10x16x512xbf16> to vector<160x512xbf16>
    %c0_9 = arith.constant 0 : index
    %c0_10 = arith.constant 0 : index
    %36 = vector.load %arg4[%c0_9, %c0_10] : memref<512x64xbf16, #tpu.memory_space<vmem>>, vector<512x64xbf16>
    %cst_11 = arith.constant dense<0.000000e+00> : vector<160x64xf32>
    %37 = tpu.matmul %35, %36, %cst_11 {dimension_numbers = #tpu.dot_dimension_numbers<[1], [0], [0], [1], [0, 0, 1, 1], [], []>} : vector<160x512xbf16>, vector<512x64xbf16>, vector<160x64xf32> -> vector<160x64xf32>
    %c0_12 = arith.constant 0 : index
    %c0_13 = arith.constant 0 : index
    %38 = vector.load %arg5[%c0_12, %c0_13] : memref<1x64xf32, #tpu.memory_space<vmem>>, vector<1x64xf32>
    %39 = vector.broadcast %38 : vector<1x64xf32> to vector<160x64xf32>
    %40 = arith.addf %37, %39 : vector<160x64xf32>
    %cst_14 = arith.constant 0.000000e+00 : f32
    %41 = vector.broadcast %cst_14 : f32 to vector<160x64xf32>
    %42 = arith.maximumf %40, %41 : vector<160x64xf32>
    %43 = arith.mulf %42, %42 : vector<160x64xf32>
    %cst_15 = arith.constant dense<0.000000e+00> : vector<160xf32>
    %44 = vector.multi_reduction <add>, %43, %cst_15 [1] : vector<160x64xf32> to vector<160xf32>
    %45 = vector.shape_cast %44 : vector<160xf32> to vector<160x1xf32>
    %cst_16 = arith.constant 1.000000e-24 : f32
    %46 = vector.broadcast %cst_16 : f32 to vector<160x1xf32>
    %47 = arith.maximumf %45, %46 : vector<160x1xf32>
    %48 = math.rsqrt %47 : vector<160x1xf32>
    %49 = vector.broadcast %48 : vector<160x1xf32> to vector<160x64xf32>
    %50 = arith.mulf %42, %49 : vector<160x64xf32>
    %51 = vector.shape_cast %50 : vector<160x64xf32> to vector<10x16x64xf32>
    %52 = arith.truncf %51 : vector<10x16x64xf32> to vector<10x16x64xbf16>
    %53 = vector.shape_cast %52 : vector<10x16x64xbf16> to vector<5x2x16x64xbf16>
    %54 = vector.extract_strided_slice %53 {offsets = [0, 0, 0, 0], sizes = [5, 1, 16, 64], strides = [1, 1, 1, 1]} : vector<5x2x16x64xbf16> to vector<5x1x16x64xbf16>
    %55 = vector.shape_cast %54 : vector<5x1x16x64xbf16> to vector<5x16x64xbf16>
    %56 = vector.extract_strided_slice %53 {offsets = [0, 1, 0, 0], sizes = [5, 1, 16, 64], strides = [1, 1, 1, 1]} : vector<5x2x16x64xbf16> to vector<5x1x16x64xbf16>
    %57 = vector.shape_cast %56 : vector<5x1x16x64xbf16> to vector<5x16x64xbf16>
    %58 = tpu.concatenate %55, %57 in 2 : vector<5x16x64xbf16>, vector<5x16x64xbf16> -> vector<5x16x128xbf16>
    %59 = vector.shape_cast %58 : vector<5x16x128xbf16> to vector<80x128xbf16>
    %c0_17 = arith.constant 0 : index
    %c0_18 = arith.constant 0 : index
    %60 = vector.load %arg6[%c0_17, %c0_18] : memref<128x32xbf16, #tpu.memory_space<vmem>>, vector<128x32xbf16>
    %cst_19 = arith.constant dense<0.000000e+00> : vector<80x32xf32>
    %61 = tpu.matmul %59, %60, %cst_19 {dimension_numbers = #tpu.dot_dimension_numbers<[1], [0], [0], [1], [0, 0, 1, 1], [], []>} : vector<80x128xbf16>, vector<128x32xbf16>, vector<80x32xf32> -> vector<80x32xf32>
    %c0_20 = arith.constant 0 : index
    %c0_21 = arith.constant 0 : index
    %62 = vector.load %arg7[%c0_20, %c0_21] : memref<1x32xf32, #tpu.memory_space<vmem>>, vector<1x32xf32>
    %63 = vector.broadcast %62 : vector<1x32xf32> to vector<80x32xf32>
    %64 = arith.addf %61, %63 : vector<80x32xf32>
    %cst_22 = arith.constant 0.000000e+00 : f32
    %65 = vector.broadcast %cst_22 : f32 to vector<80x32xf32>
    %66 = arith.maximumf %64, %65 : vector<80x32xf32>
    %67 = arith.mulf %66, %66 : vector<80x32xf32>
    %cst_23 = arith.constant dense<0.000000e+00> : vector<80xf32>
    %68 = vector.multi_reduction <add>, %67, %cst_23 [1] : vector<80x32xf32> to vector<80xf32>
    %69 = vector.shape_cast %68 : vector<80xf32> to vector<80x1xf32>
    %cst_24 = arith.constant 1.000000e-24 : f32
    %70 = vector.broadcast %cst_24 : f32 to vector<80x1xf32>
    %71 = arith.maximumf %69, %70 : vector<80x1xf32>
    %72 = math.rsqrt %71 : vector<80x1xf32>
    %73 = vector.broadcast %72 : vector<80x1xf32> to vector<80x32xf32>
    %74 = arith.mulf %66, %73 : vector<80x32xf32>
    %75 = vector.shape_cast %74 : vector<80x32xf32> to vector<5x16x32xf32>
    %76 = arith.truncf %75 : vector<5x16x32xf32> to vector<5x16x32xbf16>
    %77 = vector.extract_strided_slice %76 {offsets = [0, 0, 0], sizes = [1, 16, 32], strides = [1, 1, 1]} : vector<5x16x32xbf16> to vector<1x16x32xbf16>
    %78 = vector.shape_cast %77 : vector<1x16x32xbf16> to vector<16x32xbf16>
    %79 = vector.extract_strided_slice %76 {offsets = [1, 0, 0], sizes = [1, 16, 32], strides = [1, 1, 1]} : vector<5x16x32xbf16> to vector<1x16x32xbf16>
    %80 = vector.shape_cast %79 : vector<1x16x32xbf16> to vector<16x32xbf16>
    %81 = vector.extract_strided_slice %76 {offsets = [2, 0, 0], sizes = [1, 16, 32], strides = [1, 1, 1]} : vector<5x16x32xbf16> to vector<1x16x32xbf16>
    %82 = vector.shape_cast %81 : vector<1x16x32xbf16> to vector<16x32xbf16>
    %83 = vector.extract_strided_slice %76 {offsets = [3, 0, 0], sizes = [1, 16, 32], strides = [1, 1, 1]} : vector<5x16x32xbf16> to vector<1x16x32xbf16>
    %84 = vector.shape_cast %83 : vector<1x16x32xbf16> to vector<16x32xbf16>
    %85 = vector.extract_strided_slice %76 {offsets = [4, 0, 0], sizes = [1, 16, 32], strides = [1, 1, 1]} : vector<5x16x32xbf16> to vector<1x16x32xbf16>
    %86 = vector.shape_cast %85 : vector<1x16x32xbf16> to vector<16x32xbf16>
    %87 = tpu.concatenate %78, %80, %82, %84, %86 in 1 : vector<16x32xbf16>, vector<16x32xbf16>, vector<16x32xbf16>, vector<16x32xbf16>, vector<16x32xbf16> -> vector<16x160xbf16>
    %c0_25 = arith.constant 0 : index
    %c0_26 = arith.constant 0 : index
    %88 = vector.load %arg8[%c0_25, %c0_26] : memref<160x64xbf16, #tpu.memory_space<vmem>>, vector<160x64xbf16>
    %cst_27 = arith.constant dense<0.000000e+00> : vector<16x64xf32>
    %89 = tpu.matmul %87, %88, %cst_27 {dimension_numbers = #tpu.dot_dimension_numbers<[1], [0], [0], [1], [0, 0, 1, 1], [], []>} : vector<16x160xbf16>, vector<160x64xbf16>, vector<16x64xf32> -> vector<16x64xf32>
    %c0_28 = arith.constant 0 : index
    %c0_29 = arith.constant 0 : index
    %90 = vector.load %arg9[%c0_28, %c0_29] : memref<1x64xf32, #tpu.memory_space<vmem>>, vector<1x64xf32>
    %91 = vector.broadcast %90 : vector<1x64xf32> to vector<16x64xf32>
    %92 = arith.addf %89, %91 : vector<16x64xf32>
    %cst_30 = arith.constant 0.000000e+00 : f32
    %93 = vector.broadcast %cst_30 : f32 to vector<16x64xf32>
    %94 = arith.minimumf %92, %93 : vector<16x64xf32>
    %cst_31 = arith.constant 0.000000e+00 : f32
    %95 = vector.broadcast %cst_31 : f32 to vector<16x64xf32>
    %96 = arith.cmpf ogt, %92, %95 : vector<16x64xf32>
    %97 = math.exp %94 : vector<16x64xf32>
    %cst_32 = arith.constant 1.000000e+00 : f32
    %98 = vector.broadcast %cst_32 : f32 to vector<16x64xf32>
    %99 = arith.subf %97, %98 : vector<16x64xf32>
    %cst_33 = arith.constant 1.67326319 : f32
    %100 = vector.broadcast %cst_33 : f32 to vector<16x64xf32>
    %101 = arith.mulf %100, %99 : vector<16x64xf32>
    %102 = arith.select %96, %92, %101 : vector<16x64xi1>, vector<16x64xf32>
    %cst_34 = arith.constant 1.05070102 : f32
    %103 = vector.broadcast %cst_34 : f32 to vector<16x64xf32>
    %104 = arith.mulf %103, %102 : vector<16x64xf32>
    %105 = arith.truncf %104 : vector<16x64xf32> to vector<16x64xbf16>
    %c0_35 = arith.constant 0 : index
    %c0_36 = arith.constant 0 : index
    %106 = vector.load %arg10[%c0_35, %c0_36] : memref<64x32xbf16, #tpu.memory_space<vmem>>, vector<64x32xbf16>
    %cst_37 = arith.constant dense<0.000000e+00> : vector<16x32xf32>
    %107 = tpu.matmul %105, %106, %cst_37 {dimension_numbers = #tpu.dot_dimension_numbers<[1], [0], [0], [1], [0, 0, 1, 1], [], []>} : vector<16x64xbf16>, vector<64x32xbf16>, vector<16x32xf32> -> vector<16x32xf32>
    %c0_38 = arith.constant 0 : index
    %c0_39 = arith.constant 0 : index
    %108 = vector.load %arg11[%c0_38, %c0_39] : memref<1x32xf32, #tpu.memory_space<vmem>>, vector<1x32xf32>
    %109 = vector.broadcast %108 : vector<1x32xf32> to vector<16x32xf32>
    %110 = arith.addf %107, %109 : vector<16x32xf32>
    %cst_40 = arith.constant 0.000000e+00 : f32
    %111 = vector.broadcast %cst_40 : f32 to vector<16x32xf32>
    %112 = arith.minimumf %110, %111 : vector<16x32xf32>
    %cst_41 = arith.constant 0.000000e+00 : f32
    %113 = vector.broadcast %cst_41 : f32 to vector<16x32xf32>
    %114 = arith.cmpf ogt, %110, %113 : vector<16x32xf32>
    %115 = math.exp %112 : vector<16x32xf32>
    %cst_42 = arith.constant 1.000000e+00 : f32
    %116 = vector.broadcast %cst_42 : f32 to vector<16x32xf32>
    %117 = arith.subf %115, %116 : vector<16x32xf32>
    %cst_43 = arith.constant 1.67326319 : f32
    %118 = vector.broadcast %cst_43 : f32 to vector<16x32xf32>
    %119 = arith.mulf %118, %117 : vector<16x32xf32>
    %120 = arith.select %114, %110, %119 : vector<16x32xi1>, vector<16x32xf32>
    %cst_44 = arith.constant 1.05070102 : f32
    %121 = vector.broadcast %cst_44 : f32 to vector<16x32xf32>
    %122 = arith.mulf %121, %120 : vector<16x32xf32>
    %123 = arith.truncf %122 : vector<16x32xf32> to vector<16x32xbf16>
    %c0_45 = arith.constant 0 : index
    %c0_46 = arith.constant 0 : index
    %124 = vector.load %arg12[%c0_45, %c0_46] : memref<32x3xbf16, #tpu.memory_space<vmem>>, vector<32x3xbf16>
    %cst_47 = arith.constant dense<0.000000e+00> : vector<16x3xf32>
    %125 = tpu.matmul %123, %124, %cst_47 {dimension_numbers = #tpu.dot_dimension_numbers<[1], [0], [0], [1], [0, 0, 1, 1], [], []>} : vector<16x32xbf16>, vector<32x3xbf16>, vector<16x3xf32> -> vector<16x3xf32>
    %c0_48 = arith.constant 0 : index
    %c0_49 = arith.constant 0 : index
    %126 = vector.load %arg13[%c0_48, %c0_49] : memref<1x3xf32, #tpu.memory_space<vmem>>, vector<1x3xf32>
    %127 = vector.broadcast %126 : vector<1x3xf32> to vector<16x3xf32>
    %128 = arith.addf %125, %127 : vector<16x3xf32>
    %c0_50 = arith.constant 0 : index
    %c0_51 = arith.constant 0 : index
    %129 = vector.load %arg14[%c0_50, %c0_51] : memref<16x3xf32, #tpu.memory_space<vmem>>, vector<16x3xf32>
    tpu.vector_store %arg14[%c0_50, %c0_51], %128 {strides = array<i32>} : memref<16x3xf32, #tpu.memory_space<vmem>>, vector<16x3xf32>,
    return
  }
  func.func @transform_0(%arg0: i32) -> (i32, i32, i32) {
    %c0_i32 = arith.constant 0 : i32
    %c0_i32_0 = arith.constant 0 : i32
    %c0_i32_1 = arith.constant 0 : i32
    return %c0_i32, %arg0, %c0_i32_0 : i32, i32, i32
  }
  func.func @transform_1(%arg0: i32) -> (i32, i32) {
    %c0_i32 = arith.constant 0 : i32
    %c0_i32_0 = arith.constant 0 : i32
    %c0_i32_1 = arith.constant 0 : i32
    return %c0_i32, %c0_i32_0 : i32, i32
  }
  func.func @transform_2(%arg0: i32) -> (i32, i32) {
    %c0_i32 = arith.constant 0 : i32
    %c0_i32_0 = arith.constant 0 : i32
    %c0_i32_1 = arith.constant 0 : i32
    return %c0_i32, %c0_i32_0 : i32, i32
  }
  func.func @transform_3(%arg0: i32) -> (i32, i32) {
    %c0_i32 = arith.constant 0 : i32
    %c0_i32_0 = arith.constant 0 : i32
    %c0_i32_1 = arith.constant 0 : i32
    return %c0_i32, %c0_i32_0 : i32, i32
  }
  func.func @transform_4(%arg0: i32) -> (i32, i32) {
    %c0_i32 = arith.constant 0 : i32
    %c0_i32_0 = arith.constant 0 : i32
    %c0_i32_1 = arith.constant 0 : i32
    return %c0_i32, %c0_i32_0 : i32, i32
  }
  func.func @transform_5(%arg0: i32) -> (i32, i32) {
    %c0_i32 = arith.constant 0 : i32
    %c0_i32_0 = arith.constant 0 : i32
    %c0_i32_1 = arith.constant 0 : i32
    return %c0_i32, %c0_i32_0 : i32, i32
  }
  func.func @transform_6(%arg0: i32) -> (i32, i32) {
    %c0_i32 = arith.constant 0 : i32
    %c0_i32_0 = arith.constant 0 : i32
    %c0_i32_1 = arith.constant 0 : i32
    return %c0_i32, %c0_i32_0 : i32, i32
  }
  func.func @transform_7(%arg0: i32) -> (i32, i32) {
    %c0_i32 = arith.constant 0 : i32
    %c0_i32_0 = arith.constant 0 : i32
    %c0_i32_1 = arith.constant 0 : i32
    return %c0_i32, %c0_i32_0 : i32, i32
  }
  func.func @transform_8(%arg0: i32) -> (i32, i32) {
    %c0_i32 = arith.constant 0 : i32
    %c0_i32_0 = arith.constant 0 : i32
    %c0_i32_1 = arith.constant 0 : i32
    return %c0_i32, %c0_i32_0 : i32, i32
  }
  func.func @transform_9(%arg0: i32) -> (i32, i32) {
    %c0_i32 = arith.constant 0 : i32
    %c0_i32_0 = arith.constant 0 : i32
    %c0_i32_1 = arith.constant 0 : i32
    return %c0_i32, %c0_i32_0 : i32, i32
  }
  func.func @transform_10(%arg0: i32) -> (i32, i32) {
    %c0_i32 = arith.constant 0 : i32
    %c0_i32_0 = arith.constant 0 : i32
    %c0_i32_1 = arith.constant 0 : i32
    return %c0_i32, %c0_i32_0 : i32, i32
  }
  func.func @transform_11(%arg0: i32) -> (i32, i32) {
    %c0_i32 = arith.constant 0 : i32
    %c0_i32_0 = arith.constant 0 : i32
    %c0_i32_1 = arith.constant 0 : i32
    return %c0_i32, %c0_i32_0 : i32, i32
  }
  func.func @transform_12(%arg0: i32) -> (i32, i32) {
    %c0_i32 = arith.constant 0 : i32
    %c0_i32_0 = arith.constant 0 : i32
    %c0_i32_1 = arith.constant 0 : i32
    return %c0_i32, %c0_i32_0 : i32, i32
  }
  func.func @transform_13(%arg0: i32) -> (i32, i32) {
    %c0_i32 = arith.constant 0 : i32
    %c0_i32_0 = arith.constant 0 : i32
    return %arg0, %c0_i32 : i32, i32
  }
}

</mosaic_0001>

<llo_original>
// kernel: classifier_forward.1
$region0: #{classifier_forward.1}
  #allocation0 [shape = 'u32[]', space=smem, size = 0x4, offset = 0x4, fixed_abs, tag = 'smem constant byte address 0x4 - core index']
  #allocation1 [shape = 'u32[72,128]{1,0:T(1,128)}', space=vmem, size = 0x9000, scoped, tag = 'internal scratch']
  %s0 = inlined_call_operand.vmem [shape: f32[25,16,8], index: 0, kind: input, shape index: {}]
  %s1 = inlined_call_operand.vmem [shape: bf16[32,128], index: 1, kind: input, shape index: {}]
  %s2 = inlined_call_operand.vmem [shape: f32[1,128], index: 2, kind: input, shape index: {}]
  %s3 = inlined_call_operand.vmem [shape: bf16[512,64], index: 3, kind: input, shape index: {}]
  %s4 = inlined_call_operand.vmem [shape: f32[1,64], index: 4, kind: input, shape index: {}]
  %s5 = inlined_call_operand.vmem [shape: bf16[128,32], index: 5, kind: input, shape index: {}]
  %s6 = inlined_call_operand.vmem [shape: f32[1,32], index: 6, kind: input, shape index: {}]
  %s7 = inlined_call_operand.vmem [shape: bf16[160,64], index: 7, kind: input, shape index: {}]
  %s8 = inlined_call_operand.vmem [shape: f32[1,64], index: 8, kind: input, shape index: {}]
  %s9 = inlined_call_operand.vmem [shape: bf16[64,32], index: 9, kind: input, shape index: {}]
  %s10 = inlined_call_operand.vmem [shape: f32[1,32], index: 10, kind: input, shape index: {}]
  %s11 = inlined_call_operand.vmem [shape: bf16[32,3], index: 11, kind: input, shape index: {}]
  %s12 = inlined_call_operand.vmem [shape: f32[1,3], index: 12, kind: input, shape index: {}]
  %s13 = inlined_call_operand.vmem [shape: f32[16,3], index: 13, kind: output, shape index: {}]
  %s14 = sld [smem:[#allocation0]]
  $region62: #{classifier_forward.1} parent=0
    _
  %s16 = ssub.s32 1, %s14
  %s17 = scalar_select 0, %s16, %s14
  // Predicated region
  $region2: #{classifier_forward.1} parent=0 // pred_check
    _
  $region3: #{classifier_forward.1} parent=0 // pred_check_branch
    %19 = sbr.rel (0) target = $region5
  $region4: #{classifier_forward.1} parent=0 // pred_region
    _
  $region5: #{classifier_forward.1} parent=0 // pred_fallthru
    _
  // Predicated region
  $region6: #{classifier_forward.1} parent=0 // pred_check
    _
  $region7: #{classifier_forward.1} parent=0 // pred_check_branch
    %21 = sbr.rel (0) target = $region9
  $region8: #{classifier_forward.1} parent=0 // pred_region
    _
  $region9: #{classifier_forward.1} parent=0 // pred_fallthru
    _
  // Predicated region
  $region10: #{classifier_forward.1} parent=0 // pred_check
    _
  $region11: #{classifier_forward.1} parent=0 // pred_check_branch
    %23 = sbr.rel (0) target = $region13
  $region12: #{classifier_forward.1} parent=0 // pred_region
    _
  $region13: #{classifier_forward.1} parent=0 // pred_fallthru
    _
  // Predicated region
  $region14: #{classifier_forward.1} parent=0 // pred_check
    _
  $region15: #{classifier_forward.1} parent=0 // pred_check_branch
    %25 = sbr.rel (0) target = $region17
  $region16: #{classifier_forward.1} parent=0 // pred_region
    _
  $region17: #{classifier_forward.1} parent=0 // pred_fallthru
    _
  // Predicated region
  $region18: #{classifier_forward.1} parent=0 // pred_check
    _
  $region19: #{classifier_forward.1} parent=0 // pred_check_branch
    %27 = sbr.rel (0) target = $region21
  $region20: #{classifier_forward.1} parent=0 // pred_region
    _
  $region21: #{classifier_forward.1} parent=0 // pred_fallthru
    _
  // Predicated region
  $region22: #{classifier_forward.1} parent=0 // pred_check
    _
  $region23: #{classifier_forward.1} parent=0 // pred_check_branch
    %29 = sbr.rel (0) target = $region25
  $region24: #{classifier_forward.1} parent=0 // pred_region
    _
  $region25: #{classifier_forward.1} parent=0 // pred_fallthru
    _
  // Predicated region
  $region26: #{classifier_forward.1} parent=0 // pred_check
    _
  $region27: #{classifier_forward.1} parent=0 // pred_check_branch
    %31 = sbr.rel (0) target = $region29
  $region28: #{classifier_forward.1} parent=0 // pred_region
    _
  $region29: #{classifier_forward.1} parent=0 // pred_fallthru
    _
  // Predicated region
  $region30: #{classifier_forward.1} parent=0 // pred_check
    _
  $region31: #{classifier_forward.1} parent=0 // pred_check_branch
    %33 = sbr.rel (0) target = $region33
  $region32: #{classifier_forward.1} parent=0 // pred_region
    _
  $region33: #{classifier_forward.1} parent=0 // pred_fallthru
    _
  // Predicated region
  $region34: #{classifier_forward.1} parent=0 // pred_check
    _
  $region35: #{classifier_forward.1} parent=0 // pred_check_branch
    %35 = sbr.rel (0) target = $region37
  $region36: #{classifier_forward.1} parent=0 // pred_region
    _
  $region37: #{classifier_forward.1} parent=0 // pred_fallthru
    _
  // Predicated region
  $region38: #{classifier_forward.1} parent=0 // pred_check
    _
  $region39: #{classifier_forward.1} parent=0 // pred_check_branch
    %37 = sbr.rel (0) target = $region41
  $region40: #{classifier_forward.1} parent=0 // pred_region
    _
  $region41: #{classifier_forward.1} parent=0 // pred_fallthru
    _
  // Predicated region
  $region42: #{classifier_forward.1} parent=0 // pred_check
    _
  $region43: #{classifier_forward.1} parent=0 // pred_check_branch
    %39 = sbr.rel (0) target = $region45
  $region44: #{classifier_forward.1} parent=0 // pred_region
    _
  $region45: #{classifier_forward.1} parent=0 // pred_fallthru
    _
  // Predicated region
  $region46: #{classifier_forward.1} parent=0 // pred_check
    _
  $region47: #{classifier_forward.1} parent=0 // pred_check_branch
    %41 = sbr.rel (0) target = $region49
  $region48: #{classifier_forward.1} parent=0 // pred_region
    _
  $region49: #{classifier_forward.1} parent=0 // pred_fallthru
    _
  // Predicated region
  $region50: #{classifier_forward.1} parent=0 // pred_check
    _
  $region51: #{classifier_forward.1} parent=0 // pred_check_branch
    %43 = sbr.rel (0) target = $region53
  $region52: #{classifier_forward.1} parent=0 // pred_region
    _
  $region53: #{classifier_forward.1} parent=0 // pred_fallthru
    _
  %v45 = vld [vmem:[%s0] sm:$0xff]
  %v46 = vld [vmem:[%s0 + $0x8] sm:$0xff]
  %v47 = vld [vmem:[%s0 + $0x10] sm:$0xff]
  %v48 = vld [vmem:[%s0 + $0x18] sm:$0xff]
  %v49 = vld [vmem:[%s0 + $0x20] sm:$0xff]
  %v50 = vld [vmem:[%s0 + $0x28] sm:$0xff]
  %v51 = vld [vmem:[%s0 + $0x30] sm:$0xff]
  %v52 = vld [vmem:[%s0 + $0x38] sm:$0xff]
  %v53 = vld [vmem:[%s0 + $0x40] sm:$0xff]
  %v54 = vld [vmem:[%s0 + $0x48] sm:$0xff]
  %v55 = vld [vmem:[%s0 + $0x50] sm:$0xff]
  %v56 = vld [vmem:[%s0 + $0x58] sm:$0xff]
  %v57 = vld [vmem:[%s0 + $0x60] sm:$0xff]
  %v58 = vld [vmem:[%s0 + $0x68] sm:$0xff]
  %v59 = vld [vmem:[%s0 + $0x70] sm:$0xff]
  %v60 = vld [vmem:[%s0 + $0x78] sm:$0xff]
  %v61 = vld [vmem:[%s0 + $0x80] sm:$0xff]
  %v62 = vld [vmem:[%s0 + $0x88] sm:$0xff]
  %v63 = vld [vmem:[%s0 + $0x90] sm:$0xff]
  %v64 = vld [vmem:[%s0 + $0x98] sm:$0xff]
  %v65 = vld [vmem:[%s0 + $0xa0] sm:$0xff]
  %v66 = vld [vmem:[%s0 + $0xa8] sm:$0xff]
  %v67 = vld [vmem:[%s0 + $0xb0] sm:$0xff]
  %v68 = vld [vmem:[%s0 + $0xb8] sm:$0xff]
  %v69 = vld [vmem:[%s0 + $0xc0] sm:$0xff]
  %v70 = vld [vmem:[%s0 + $0xc8] sm:$0xff]
  %v71 = vld [vmem:[%s0 + $0xd0] sm:$0xff]
  %v72 = vld [vmem:[%s0 + $0xd8] sm:$0xff]
  %v73 = vld [vmem:[%s0 + $0xe0] sm:$0xff]
  %v74 = vld [vmem:[%s0 + $0xe8] sm:$0xff]
  %v75 = vld [vmem:[%s0 + $0xf0] sm:$0xff]
  %v76 = vld [vmem:[%s0 + $0xf8] sm:$0xff]
  %v77 = vld [vmem:[%s0 + $0x100] sm:$0xff]
  %v78 = vld [vmem:[%s0 + $0x108] sm:$0xff]
  %v79 = vld [vmem:[%s0 + $0x110] sm:$0xff]
  %v80 = vld [vmem:[%s0 + $0x118] sm:$0xff]
  %v81 = vld [vmem:[%s0 + $0x120] sm:$0xff]
  %v82 = vld [vmem:[%s0 + $0x128] sm:$0xff]
  %v83 = vld [vmem:[%s0 + $0x130] sm:$0xff]
  %v84 = vld [vmem:[%s0 + $0x138] sm:$0xff]
  %v85 = vld [vmem:[%s0 + $0x140] sm:$0xff]
  %v86 = vld [vmem:[%s0 + $0x148] sm:$0xff]
  %v87 = vld [vmem:[%s0 + $0x150] sm:$0xff]
  %v88 = vld [vmem:[%s0 + $0x158] sm:$0xff]
  %v89 = vld [vmem:[%s0 + $0x160] sm:$0xff]
  %v90 = vld [vmem:[%s0 + $0x168] sm:$0xff]
  %v91 = vld [vmem:[%s0 + $0x170] sm:$0xff]
  %v92 = vld [vmem:[%s0 + $0x178] sm:$0xff]
  %v93 = vld [vmem:[%s0 + $0x180] sm:$0xff]
  %v94 = vld [vmem:[%s0 + $0x188] sm:$0xff]
  %v95 = vpack.c.bf16 %v45, %v45
  %v96 = vpack.c.bf16 %v46, %v46
  %v97 = vpack.c.bf16 %v47, %v47
  %v98 = vpack.c.bf16 %v48, %v48
  %v99 = vpack.c.bf16 %v49, %v49
  %v100 = vpack.c.bf16 %v50, %v50
  %v101 = vpack.c.bf16 %v51, %v51
  %v102 = vpack.c.bf16 %v52, %v52
  %v103 = vpack.c.bf16 %v53, %v53
  %v104 = vpack.c.bf16 %v54, %v54
  %v105 = vpack.c.bf16 %v55, %v55
  %v106 = vpack.c.bf16 %v56, %v56
  %v107 = vpack.c.bf16 %v57, %v57
  %v108 = vpack.c.bf16 %v58, %v58
  %v109 = vpack.c.bf16 %v59, %v59
  %v110 = vpack.c.bf16 %v60, %v60
  %v111 = vpack.c.bf16 %v61, %v61
  %v112 = vpack.c.bf16 %v62, %v62
  %v113 = vpack.c.bf16 %v63, %v63
  %v114 = vpack.c.bf16 %v64, %v64
  %v115 = vpack.c.bf16 %v65, %v65
  %v116 = vpack.c.bf16 %v66, %v66
  %v117 = vpack.c.bf16 %v67, %v67
  %v118 = vpack.c.bf16 %v68, %v68
  %v119 = vpack.c.bf16 %v69, %v69
  %v120 = vpack.c.bf16 %v70, %v70
  %v121 = vpack.c.bf16 %v71, %v71
  %v122 = vpack.c.bf16 %v72, %v72
  %v123 = vpack.c.bf16 %v73, %v73
  %v124 = vpack.c.bf16 %v74, %v74
  %v125 = vpack.c.bf16 %v75, %v75
  %v126 = vpack.c.bf16 %v76, %v76
  %v127 = vpack.c.bf16 %v77, %v77
  %v128 = vpack.c.bf16 %v78, %v78
  %v129 = vpack.c.bf16 %v79, %v79
  %v130 = vpack.c.bf16 %v80, %v80
  %v131 = vpack.c.bf16 %v81, %v81
  %v132 = vpack.c.bf16 %v82, %v82
  %v133 = vpack.c.bf16 %v83, %v83
  %v134 = vpack.c.bf16 %v84, %v84
  %v135 = vpack.c.bf16 %v85, %v85
  %v136 = vpack.c.bf16 %v86, %v86
  %v137 = vpack.c.bf16 %v87, %v87
  %v138 = vpack.c.bf16 %v88, %v88
  %v139 = vpack.c.bf16 %v89, %v89
  %v140 = vpack.c.bf16 %v90, %v90
  %v141 = vpack.c.bf16 %v91, %v91
  %v142 = vpack.c.bf16 %v92, %v92
  %v143 = vpack.c.bf16 %v93, %v93
  %v144 = vpack.c.bf16 %v94, %v94
  %v189 = vunpack.c.l.b16 %v95
  %v190 = vunpack.c.l.b16 %v96
  %v191 = vunpack.c.l.b16 %v97
  %v192 = vunpack.c.l.b16 %v98
  %v193 = vunpack.c.l.b16 %v99
  %v194 = vunpack.c.l.b16 %v100
  %v195 = vunpack.c.l.b16 %v101
  %v196 = vunpack.c.l.b16 %v102
  %v197 = vunpack.c.l.b16 %v103
  %v198 = vunpack.c.l.b16 %v104
  %v199 = vunpack.c.l.b16 %v105
  %v200 = vunpack.c.l.b16 %v106
  %v201 = vunpack.c.l.b16 %v107
  %v202 = vunpack.c.l.b16 %v108
  %v203 = vunpack.c.l.b16 %v109
  %v204 = vunpack.c.l.b16 %v110
  %v205 = vunpack.c.l.b16 %v111
  %v206 = vunpack.c.l.b16 %v112
  %v207 = vunpack.c.l.b16 %v113
  %v208 = vunpack.c.l.b16 %v114
  %v209 = vunpack.c.l.b16 %v115
  %v210 = vunpack.c.l.b16 %v116
  %v211 = vunpack.c.l.b16 %v117
  %v212 = vunpack.c.l.b16 %v118
  %v213 = vunpack.c.l.b16 %v119
  %v214 = vunpack.c.l.b16 %v120
  %v215 = vunpack.c.l.b16 %v121
  %v216 = vunpack.c.l.b16 %v122
  %v217 = vunpack.c.l.b16 %v123
  %v218 = vunpack.c.l.b16 %v124
  %v219 = vunpack.c.l.b16 %v125
  %v220 = vunpack.c.l.b16 %v126
  %v221 = vunpack.c.l.b16 %v127
  %v222 = vunpack.c.l.b16 %v128
  %v223 = vunpack.c.l.b16 %v129
  %v224 = vunpack.c.l.b16 %v130
  %v225 = vunpack.c.l.b16 %v131
  %v226 = vunpack.c.l.b16 %v132
  %v227 = vunpack.c.l.b16 %v133
  %v228 = vunpack.c.l.b16 %v134
  %v229 = vunpack.c.l.b16 %v135
  %v230 = vunpack.c.l.b16 %v136
  %v231 = vunpack.c.l.b16 %v137
  %v232 = vunpack.c.l.b16 %v138
  %v233 = vpack.c.b16 %v190, %v189
  %v234 = vpack.c.b16 %v192, %v191
  %v235 = vpack.c.b16 %v194, %v193
  %v236 = vpack.c.b16 %v196, %v195
  %v237 = vpack.c.b16 %v198, %v197
  %v238 = vpack.c.b16 %v200, %v199
  %v239 = vpack.c.b16 %v202, %v201
  %v240 = vpack.c.b16 %v204, %v203
  %v241 = vpack.c.b16 %v206, %v205
  %v242 = vpack.c.b16 %v208, %v207
  %v243 = vpack.c.b16 %v210, %v209
  %v244 = vpack.c.b16 %v212, %v211
  %v245 = vpack.c.b16 %v214, %v213
  %v246 = vpack.c.b16 %v216, %v215
  %v247 = vpack.c.b16 %v218, %v217
  %v248 = vpack.c.b16 %v220, %v219
  %v249 = vpack.c.b16 %v222, %v221
  %v250 = vpack.c.b16 %v224, %v223
  %v251 = vpack.c.b16 %v226, %v225
  %v252 = vpack.c.b16 %v228, %v227
  %v253 = vpack.c.b16 %v230, %v229
  %v254 = vpack.c.b16 %v232, %v231
  %v257 = vunpack.c.l.b16 %v139
  %v258 = vunpack.c.l.b16 %v140
  %v259 = vpack.c.b16 %v258, %v257
  %260 = vrot.lane.b32.xlu0 %v234, 8
  %v261 = vpop.permute.xlu0 %260
  %262 = vrot.lane.b32.xlu0 %v235, 8
  %v263 = vpop.permute.xlu0 %262
  %264 = vrot.lane.b32.xlu0 %v236, 8
  %v265 = vpop.permute.xlu0 %264
  %266 = vrot.lane.b32.xlu0 %v237, 8
  %v267 = vpop.permute.xlu0 %266
  %268 = vrot.lane.b32.xlu0 %v238, 8
  %v269 = vpop.permute.xlu0 %268
  %270 = vrot.lane.b32.xlu0 %v239, 8
  %v271 = vpop.permute.xlu0 %270
  %272 = vrot.lane.b32.xlu0 %v240, 8
  %v273 = vpop.permute.xlu0 %272
  %274 = vrot.lane.b32.xlu0 %v241, 8
  %v275 = vpop.permute.xlu0 %274
  %276 = vrot.lane.b32.xlu0 %v242, 8
  %v277 = vpop.permute.xlu0 %276
  %278 = vrot.lane.b32.xlu0 %v243, 8
  %v279 = vpop.permute.xlu0 %278
  %280 = vrot.lane.b32.xlu0 %v244, 8
  %v281 = vpop.permute.xlu0 %280
  %282 = vrot.lane.b32.xlu0 %v245, 8
  %v283 = vpop.permute.xlu0 %282
  %284 = vrot.lane.b32.xlu0 %v246, 8
  %v285 = vpop.permute.xlu0 %284
  %286 = vrot.lane.b32.xlu0 %v247, 8
  %v287 = vpop.permute.xlu0 %286
  %288 = vrot.lane.b32.xlu0 %v248, 8
  %v289 = vpop.permute.xlu0 %288
  %290 = vrot.lane.b32.xlu0 %v249, 8
  %v291 = vpop.permute.xlu0 %290
  %292 = vrot.lane.b32.xlu0 %v250, 8
  %v293 = vpop.permute.xlu0 %292
  %294 = vrot.lane.b32.xlu0 %v251, 8
  %v295 = vpop.permute.xlu0 %294
  %296 = vrot.lane.b32.xlu0 %v252, 8
  %v297 = vpop.permute.xlu0 %296
  %298 = vrot.lane.b32.xlu0 %v253, 8
  %v299 = vpop.permute.xlu0 %298
  %300 = vrot.lane.b32.xlu0 %v254, 8
  %v301 = vpop.permute.xlu0 %300
  %302 = vrot.lane.b32.xlu0 %v259, 8
  %v303 = vpop.permute.xlu0 %302
  %v306 = vunpack.c.l.b16 %v141
  %v307 = vunpack.c.l.b16 %v142
  %v308 = vpack.c.b16 %v307, %v306
  %309 = vrot.lane.b32.xlu0 %v235, 16
  %v310 = vpop.permute.xlu0 %309
  %311 = vrot.lane.b32.xlu0 %v236, 16
  %v312 = vpop.permute.xlu0 %311
  %313 = vrot.lane.b32.xlu0 %v237, 16
  %v314 = vpop.permute.xlu0 %313
  %315 = vrot.lane.b32.xlu0 %v238, 16
  %v316 = vpop.permute.xlu0 %315
  %317 = vrot.lane.b32.xlu0 %v239, 16
  %v318 = vpop.permute.xlu0 %317
  %319 = vrot.lane.b32.xlu0 %v240, 16
  %v320 = vpop.permute.xlu0 %319
  %321 = vrot.lane.b32.xlu0 %v241, 16
  %v322 = vpop.permute.xlu0 %321
  %323 = vrot.lane.b32.xlu0 %v242, 16
  %v324 = vpop.permute.xlu0 %323
  %325 = vrot.lane.b32.xlu0 %v243, 16
  %v326 = vpop.permute.xlu0 %325
  %327 = vrot.lane.b32.xlu0 %v244, 16
  %v328 = vpop.permute.xlu0 %327
  %329 = vrot.lane.b32.xlu0 %v245, 16
  %v330 = vpop.permute.xlu0 %329
  %331 = vrot.lane.b32.xlu0 %v246, 16
  %v332 = vpop.permute.xlu0 %331
  %333 = vrot.lane.b32.xlu0 %v247, 16
  %v334 = vpop.permute.xlu0 %333
  %335 = vrot.lane.b32.xlu0 %v248, 16
  %v336 = vpop.permute.xlu0 %335
  %337 = vrot.lane.b32.xlu0 %v249, 16
  %v338 = vpop.permute.xlu0 %337
  %339 = vrot.lane.b32.xlu0 %v250, 16
  %v340 = vpop.permute.xlu0 %339
  %341 = vrot.lane.b32.xlu0 %v251, 16
  %v342 = vpop.permute.xlu0 %341
  %343 = vrot.lane.b32.xlu0 %v252, 16
  %v344 = vpop.permute.xlu0 %343
  %345 = vrot.lane.b32.xlu0 %v253, 16
  %v346 = vpop.permute.xlu0 %345
  %347 = vrot.lane.b32.xlu0 %v254, 16
  %v348 = vpop.permute.xlu0 %347
  %349 = vrot.lane.b32.xlu0 %v259, 16
  %v350 = vpop.permute.xlu0 %349
  %351 = vrot.lane.b32.xlu0 %v308, 16
  %v352 = vpop.permute.xlu0 %351
  %v355 = vunpack.c.l.b16 %v143
  %v356 = vunpack.c.l.b16 %v144
  %v357 = vpack.c.b16 %v356, %v355
  %358 = vrot.lane.b32.xlu0 %v236, 24
  %v359 = vpop.permute.xlu0 %358
  %360 = vrot.lane.b32.xlu0 %v237, 24
  %v361 = vpop.permute.xlu0 %360
  %362 = vrot.lane.b32.xlu0 %v238, 24
  %v363 = vpop.permute.xlu0 %362
  %364 = vrot.lane.b32.xlu0 %v239, 24
  %v365 = vpop.permute.xlu0 %364
  %366 = vrot.lane.b32.xlu0 %v240, 24
  %v367 = vpop.permute.xlu0 %366
  %368 = vrot.lane.b32.xlu0 %v241, 24
  %v369 = vpop.permute.xlu0 %368
  %370 = vrot.lane.b32.xlu0 %v242, 24
  %v371 = vpop.permute.xlu0 %370
  %372 = vrot.lane.b32.xlu0 %v243, 24
  %v373 = vpop.permute.xlu0 %372
  %374 = vrot.lane.b32.xlu0 %v244, 24
  %v375 = vpop.permute.xlu0 %374
  %376 = vrot.lane.b32.xlu0 %v245, 24
  %v377 = vpop.permute.xlu0 %376
  %378 = vrot.lane.b32.xlu0 %v246, 24
  %v379 = vpop.permute.xlu0 %378
  %380 = vrot.lane.b32.xlu0 %v247, 24
  %v381 = vpop.permute.xlu0 %380
  %382 = vrot.lane.b32.xlu0 %v248, 24
  %v383 = vpop.permute.xlu0 %382
  %384 = vrot.lane.b32.xlu0 %v249, 24
  %v385 = vpop.permute.xlu0 %384
  %386 = vrot.lane.b32.xlu0 %v250, 24
  %v387 = vpop.permute.xlu0 %386
  %388 = vrot.lane.b32.xlu0 %v251, 24
  %v389 = vpop.permute.xlu0 %388
  %390 = vrot.lane.b32.xlu0 %v252, 24
  %v391 = vpop.permute.xlu0 %390
  %392 = vrot.lane.b32.xlu0 %v253, 24
  %v393 = vpop.permute.xlu0 %392
  %394 = vrot.lane.b32.xlu0 %v254, 24
  %v395 = vpop.permute.xlu0 %394
  %396 = vrot.lane.b32.xlu0 %v259, 24
  %v397 = vpop.permute.xlu0 %396
  %398 = vrot.lane.b32.xlu0 %v308, 24
  %v399 = vpop.permute.xlu0 %398
  %400 = vrot.lane.b32.xlu0 %v357, 24
  %v401 = vpop.permute.xlu0 %400
  %vm402 = vcmask 64512
  %v405 = vsel %vm402, %v233, %v261
  %v408 = vsel %vm402, %v234, %v263
  %v411 = vsel %vm402, %v235, %v265
  %v414 = vsel %vm402, %v236, %v267
  %v417 = vsel %vm402, %v237, %v269
  %v420 = vsel %vm402, %v238, %v271
  %v423 = vsel %vm402, %v239, %v273
  %v426 = vsel %vm402, %v240, %v275
  %v429 = vsel %vm402, %v241, %v277
  %v432 = vsel %vm402, %v242, %v279
  %v435 = vsel %vm402, %v243, %v281
  %v438 = vsel %vm402, %v244, %v283
  %v441 = vsel %vm402, %v245, %v285
  %v444 = vsel %vm402, %v246, %v287
  %v447 = vsel %vm402, %v247, %v289
  %v450 = vsel %vm402, %v248, %v291
  %v453 = vsel %vm402, %v249, %v293
  %v456 = vsel %vm402, %v250, %v295
  %v459 = vsel %vm402, %v251, %v297
  %v462 = vsel %vm402, %v252, %v299
  %v465 = vsel %vm402, %v253, %v301
  %v468 = vsel %vm402, %v254, %v303
  %vm469 = vcmask 130048
  %v471 = vsel %vm469, %v405, %v310
  %v473 = vsel %vm469, %v408, %v312
  %v475 = vsel %vm469, %v411, %v314
  %v477 = vsel %vm469, %v414, %v316
  %v479 = vsel %vm469, %v417, %v318
  %v481 = vsel %vm469, %v420, %v320
  %v483 = vsel %vm469, %v423, %v322
  %v485 = vsel %vm469, %v426, %v324
  %v487 = vsel %vm469, %v429, %v326
  %v489 = vsel %vm469, %v432, %v328
  %v491 = vsel %vm469, %v435, %v330
  %v493 = vsel %vm469, %v438, %v332
  %v495 = vsel %vm469, %v441, %v334
  %v497 = vsel %vm469, %v444, %v336
  %v499 = vsel %vm469, %v447, %v338
  %v501 = vsel %vm469, %v450, %v340
  %v503 = vsel %vm469, %v453, %v342
  %v505 = vsel %vm469, %v456, %v344
  %v507 = vsel %vm469, %v459, %v346
  %v509 = vsel %vm469, %v462, %v348
  %v511 = vsel %vm469, %v465, %v350
  %v513 = vsel %vm469, %v468, %v352
  %vm514 = vcmask 195584
  %v516 = vsel %vm514, %v471, %v359
  %v518 = vsel %vm514, %v473, %v361
  %v520 = vsel %vm514, %v475, %v363
  %v522 = vsel %vm514, %v477, %v365
  %v524 = vsel %vm514, %v479, %v367
  %v526 = vsel %vm514, %v481, %v369
  %v528 = vsel %vm514, %v483, %v371
  %v530 = vsel %vm514, %v485, %v373
  %v532 = vsel %vm514, %v487, %v375
  %v534 = vsel %vm514, %v489, %v377
  %v536 = vsel %vm514, %v491, %v379
  %v538 = vsel %vm514, %v493, %v381
  %v540 = vsel %vm514, %v495, %v383
  %v542 = vsel %vm514, %v497, %v385
  %v544 = vsel %vm514, %v499, %v387
  %v546 = vsel %vm514, %v501, %v389
  %v548 = vsel %vm514, %v503, %v391
  %v550 = vsel %vm514, %v505, %v393
  %v552 = vsel %vm514, %v507, %v395
  %v554 = vsel %vm514, %v509, %v397
  %v556 = vsel %vm514, %v511, %v399
  %v558 = vsel %vm514, %v513, %v401
  %v559 = vld [vmem:[%s1] sm:$0xf]
  %v560 = vld [vmem:[%s1 + $0x4] sm:$0xf]
  %v561 = vld [vmem:[%s1 + $0x8] sm:$0xf]
  %v562 = vld [vmem:[%s1 + $0xc] sm:$0xf]
  %v563 = vld [vmem:[%s2] sm:$0x1]
  %v565 = vperm.slane %v563, 0
  %v571 = vunpack.c.l.b16 %v559
  %v572 = vunpack.c.l.b16 %v560
  %v573 = vunpack.c.l.b16 %v561
  %v574 = vunpack.c.l.b16 %v562
  %v575 = vpack.c.b16 %v572, %v571
  %v576 = vpack.c.b16 %v574, %v573
  %vm579 = vcmask 261120
  %v580 = vsel %vm579, %v516, 0
  %v582 = vsel %vm579, %v518, 0
  %v584 = vsel %vm579, %v520, 0
  %v586 = vsel %vm579, %v522, 0
  %v588 = vsel %vm579, %v524, 0
  %v590 = vsel %vm579, %v526, 0
  %v592 = vsel %vm579, %v528, 0
  %v594 = vsel %vm579, %v530, 0
  %v596 = vsel %vm579, %v532, 0
  %v598 = vsel %vm579, %v534, 0
  %v600 = vsel %vm579, %v536, 0
  %v602 = vsel %vm579, %v538, 0
  %v604 = vsel %vm579, %v540, 0
  %v606 = vsel %vm579, %v542, 0
  %v608 = vsel %vm579, %v544, 0
  %v610 = vsel %vm579, %v546, 0
  %v612 = vsel %vm579, %v548, 0
  %v614 = vsel %vm579, %v550, 0
  %v616 = vsel %vm579, %v552, 0
  %v618 = vsel %vm579, %v554, 0
  %v620 = vsel %vm579, %v556, 0
  %v622 = vsel %vm579, %v558, 0
  %624 = vmatpush.bf16.msra.mxu0 0
  %625 = vmatpush.bf16.msra.mxu0 0
  %626 = vmatpush.bf16.msra.mxu0 0
  %627 = vmatpush.bf16.msra.mxu0 0
  %628 = vmatpush.bf16.msra.mxu0 0
  %629 = vmatpush.bf16.msra.mxu0 0
  %630 = vmatpush.bf16.msra.mxu0 %v576
  %631 = vmatpush.bf16.msra.mxu0 %v575
  %632 = vmatmul.bf16.gmra.mxu0 %v580
  %v633 = vpop.f32.mrf.mxu0
  %v634 = vadd.f32 %v565, %v633
  %v635 = vpop.f32.mrf.mxu0
  %v636 = vadd.f32 %v565, %v635
  %637 = vmatmul.bf16.gmra.mxu0 %v582
  %v638 = vpop.f32.mrf.mxu0
  %v639 = vadd.f32 %v565, %v638
  %v640 = vpop.f32.mrf.mxu0
  %v641 = vadd.f32 %v565, %v640
  %642 = vmatmul.bf16.gmra.mxu0 %v584
  %v643 = vpop.f32.mrf.mxu0
  %v644 = vadd.f32 %v565, %v643
  %v645 = vpop.f32.mrf.mxu0
  %v646 = vadd.f32 %v565, %v645
  %647 = vmatmul.bf16.gmra.mxu0 %v586
  %v648 = vpop.f32.mrf.mxu0
  %v649 = vadd.f32 %v565, %v648
  %v650 = vpop.f32.mrf.mxu0
  %v651 = vadd.f32 %v565, %v650
  %652 = vmatmul.bf16.gmra.mxu0 %v588
  %v653 = vpop.f32.mrf.mxu0
  %v654 = vadd.f32 %v565, %v653
  %v655 = vpop.f32.mrf.mxu0
  %v656 = vadd.f32 %v565, %v655
  %657 = vmatmul.bf16.gmra.mxu0 %v590
  %v658 = vpop.f32.mrf.mxu0
  %v659 = vadd.f32 %v565, %v658
  %v660 = vpop.f32.mrf.mxu0
  %v661 = vadd.f32 %v565, %v660
  %662 = vmatmul.bf16.gmra.mxu0 %v592
  %v663 = vpop.f32.mrf.mxu0
  %v664 = vadd.f32 %v565, %v663
  %v665 = vpop.f32.mrf.mxu0
  %v666 = vadd.f32 %v565, %v665
  %667 = vmatmul.bf16.gmra.mxu0 %v594
  %v668 = vpop.f32.mrf.mxu0
  %v669 = vadd.f32 %v565, %v668
  %v670 = vpop.f32.mrf.mxu0
  %v671 = vadd.f32 %v565, %v670
  %672 = vmatmul.bf16.gmra.mxu0 %v596
  %v673 = vpop.f32.mrf.mxu0
  %v674 = vadd.f32 %v565, %v673
  %v675 = vpop.f32.mrf.mxu0
  %v676 = vadd.f32 %v565, %v675
  %677 = vmatmul.bf16.gmra.mxu0 %v598
  %v678 = vpop.f32.mrf.mxu0
  %v679 = vadd.f32 %v565, %v678
  %v680 = vpop.f32.mrf.mxu0
  %v681 = vadd.f32 %v565, %v680
  %682 = vmatmul.bf16.gmra.mxu0 %v600
  %v683 = vpop.f32.mrf.mxu0
  %v684 = vadd.f32 %v565, %v683
  %v685 = vpop.f32.mrf.mxu0
  %v686 = vadd.f32 %v565, %v685
  %687 = vmatmul.bf16.gmra.mxu0 %v602
  %v688 = vpop.f32.mrf.mxu0
  %v689 = vadd.f32 %v565, %v688
  %v690 = vpop.f32.mrf.mxu0
  %v691 = vadd.f32 %v565, %v690
  %692 = vmatmul.bf16.gmra.mxu0 %v604
  %v693 = vpop.f32.mrf.mxu0
  %v694 = vadd.f32 %v565, %v693
  %v695 = vpop.f32.mrf.mxu0
  %v696 = vadd.f32 %v565, %v695
  %697 = vmatmul.bf16.gmra.mxu0 %v606
  %v698 = vpop.f32.mrf.mxu0
  %v699 = vadd.f32 %v565, %v698
  %v700 = vpop.f32.mrf.mxu0
  %v701 = vadd.f32 %v565, %v700
  %702 = vmatmul.bf16.gmra.mxu0 %v608
  %v703 = vpop.f32.mrf.mxu0
  %v704 = vadd.f32 %v565, %v703
  %v705 = vpop.f32.mrf.mxu0
  %v706 = vadd.f32 %v565, %v705
  %707 = vmatmul.bf16.gmra.mxu0 %v610
  %v708 = vpop.f32.mrf.mxu0
  %v709 = vadd.f32 %v565, %v708
  %v710 = vpop.f32.mrf.mxu0
  %v711 = vadd.f32 %v565, %v710
  %712 = vmatmul.bf16.gmra.mxu0 %v612
  %v713 = vpop.f32.mrf.mxu0
  %v714 = vadd.f32 %v565, %v713
  %v715 = vpop.f32.mrf.mxu0
  %v716 = vadd.f32 %v565, %v715
  %717 = vmatmul.bf16.gmra.mxu0 %v614
  %v718 = vpop.f32.mrf.mxu0
  %v719 = vadd.f32 %v565, %v718
  %v720 = vpop.f32.mrf.mxu0
  %v721 = vadd.f32 %v565, %v720
  %722 = vmatmul.bf16.gmra.mxu0 %v616
  %v723 = vpop.f32.mrf.mxu0
  %v724 = vadd.f32 %v565, %v723
  %v725 = vpop.f32.mrf.mxu0
  %v726 = vadd.f32 %v565, %v725
  %727 = vmatmul.bf16.gmra.mxu0 %v618
  %v728 = vpop.f32.mrf.mxu0
  %v729 = vadd.f32 %v565, %v728
  %v730 = vpop.f32.mrf.mxu0
  %v731 = vadd.f32 %v565, %v730
  %732 = vmatmul.bf16.gmra.mxu0 %v620
  %v733 = vpop.f32.mrf.mxu0
  %v734 = vadd.f32 %v565, %v733
  %v735 = vpop.f32.mrf.mxu0
  %v736 = vadd.f32 %v565, %v735
  %737 = vmatmul.bf16.gmra.mxu0 %v622
  %v738 = vpop.f32.mrf.mxu0
  %v739 = vadd.f32 %v565, %v738
  %v740 = vpop.f32.mrf.mxu0
  %v741 = vadd.f32 %v565, %v740
  %742 = vdwg.mxu0
  %v743 = vmax.f32 %v634, 0.0
  %v744 = vmax.f32 %v636, 0.0
  %v745 = vmax.f32 %v639, 0.0
  %v746 = vmax.f32 %v641, 0.0
  %v747 = vmax.f32 %v644, 0.0
  %v748 = vmax.f32 %v646, 0.0
  %v749 = vmax.f32 %v649, 0.0
  %v750 = vmax.f32 %v651, 0.0
  %v751 = vmax.f32 %v654, 0.0
  %v752 = vmax.f32 %v656, 0.0
  %v753 = vmax.f32 %v659, 0.0
  %v754 = vmax.f32 %v661, 0.0
  %v755 = vmax.f32 %v664, 0.0
  %v756 = vmax.f32 %v666, 0.0
  %v757 = vmax.f32 %v669, 0.0
  %v758 = vmax.f32 %v671, 0.0
  %v759 = vmax.f32 %v674, 0.0
  %v760 = vmax.f32 %v676, 0.0
  %v761 = vmax.f32 %v679, 0.0
  %v762 = vmax.f32 %v681, 0.0
  %v763 = vmax.f32 %v684, 0.0
  %v764 = vmax.f32 %v686, 0.0
  %v765 = vmax.f32 %v689, 0.0
  %v766 = vmax.f32 %v691, 0.0
  %v767 = vmax.f32 %v694, 0.0
  %v768 = vmax.f32 %v696, 0.0
  %v769 = vmax.f32 %v699, 0.0
  %v770 = vmax.f32 %v701, 0.0
  %v771 = vmax.f32 %v704, 0.0
  %v772 = vmax.f32 %v706, 0.0
  %v773 = vmax.f32 %v709, 0.0
  %v774 = vmax.f32 %v711, 0.0
  %v775 = vmax.f32 %v714, 0.0
  %v776 = vmax.f32 %v716, 0.0
  %v777 = vmax.f32 %v719, 0.0
  %v778 = vmax.f32 %v721, 0.0
  %v779 = vmax.f32 %v724, 0.0
  %v780 = vmax.f32 %v726, 0.0
  %v781 = vmax.f32 %v729, 0.0
  %v782 = vmax.f32 %v731, 0.0
  %v783 = vmax.f32 %v734, 0.0
  %v784 = vmax.f32 %v736, 0.0
  %v785 = vmax.f32 %v739, 0.0
  %v786 = vmax.f32 %v741, 0.0
  %v787 = vmul.f32 %v743, %v743
  %v788 = vmul.f32 %v744, %v744
  %v789 = vmul.f32 %v745, %v745
  %v790 = vmul.f32 %v746, %v746
  %v791 = vmul.f32 %v747, %v747
  %v792 = vmul.f32 %v748, %v748
  %v793 = vmul.f32 %v749, %v749
  %v794 = vmul.f32 %v750, %v750
  %v795 = vmul.f32 %v751, %v751
  %v796 = vmul.f32 %v752, %v752
  %v797 = vmul.f32 %v753, %v753
  %v798 = vmul.f32 %v754, %v754
  %v799 = vmul.f32 %v755, %v755
  %v800 = vmul.f32 %v756, %v756
  %v801 = vmul.f32 %v757, %v757
  %v802 = vmul.f32 %v758, %v758
  %v803 = vmul.f32 %v759, %v759
  %v804 = vmul.f32 %v760, %v760
  %v805 = vmul.f32 %v761, %v761
  %v806 = vmul.f32 %v762, %v762
  %v807 = vmul.f32 %v763, %v763
  %v808 = vmul.f32 %v764, %v764
  %v809 = vmul.f32 %v765, %v765
  %v810 = vmul.f32 %v766, %v766
  %v811 = vmul.f32 %v767, %v767
  %v812 = vmul.f32 %v768, %v768
  %v813 = vmul.f32 %v769, %v769
  %v814 = vmul.f32 %v770, %v770
  %v815 = vmul.f32 %v771, %v771
  %v816 = vmul.f32 %v772, %v772
  %v817 = vmul.f32 %v773, %v773
  %v818 = vmul.f32 %v774, %v774
  %v819 = vmul.f32 %v775, %v775
  %v820 = vmul.f32 %v776, %v776
  %v821 = vmul.f32 %v777, %v777
  %v822 = vmul.f32 %v778, %v778
  %v823 = vmul.f32 %v779, %v779
  %v824 = vmul.f32 %v780, %v780
  %v825 = vmul.f32 %v781, %v781
  %v826 = vmul.f32 %v782, %v782
  %v827 = vmul.f32 %v783, %v783
  %v828 = vmul.f32 %v784, %v784
  %v829 = vmul.f32 %v785, %v785
  %v830 = vmul.f32 %v786, %v786
  %831 = vadd.xlane.f32.xlu0 %v787
  %v832 = vpop.xlane.xlu0 %831
  %833 = vadd.xlane.f32.xlu0 %v788
  %v834 = vpop.xlane.xlu0 %833
  %835 = vadd.xlane.f32.xlu0 %v789
  %v836 = vpop.xlane.xlu0 %835
  %837 = vadd.xlane.f32.xlu0 %v790
  %v838 = vpop.xlane.xlu0 %837
  %839 = vadd.xlane.f32.xlu0 %v791
  %v840 = vpop.xlane.xlu0 %839
  %841 = vadd.xlane.f32.xlu0 %v792
  %v842 = vpop.xlane.xlu0 %841
  %843 = vadd.xlane.f32.xlu0 %v793
  %v844 = vpop.xlane.xlu0 %843
  %845 = vadd.xlane.f32.xlu0 %v794
  %v846 = vpop.xlane.xlu0 %845
  %847 = vadd.xlane.f32.xlu0 %v795
  %v848 = vpop.xlane.xlu0 %847
  %849 = vadd.xlane.f32.xlu0 %v796
  %v850 = vpop.xlane.xlu0 %849
  %851 = vadd.xlane.f32.xlu0 %v797
  %v852 = vpop.xlane.xlu0 %851
  %853 = vadd.xlane.f32.xlu0 %v798
  %v854 = vpop.xlane.xlu0 %853
  %855 = vadd.xlane.f32.xlu0 %v799
  %v856 = vpop.xlane.xlu0 %855
  %857 = vadd.xlane.f32.xlu0 %v800
  %v858 = vpop.xlane.xlu0 %857
  %859 = vadd.xlane.f32.xlu0 %v801
  %v860 = vpop.xlane.xlu0 %859
  %861 = vadd.xlane.f32.xlu0 %v802
  %v862 = vpop.xlane.xlu0 %861
  %863 = vadd.xlane.f32.xlu0 %v803
  %v864 = vpop.xlane.xlu0 %863
  %865 = vadd.xlane.f32.xlu0 %v804
  %v866 = vpop.xlane.xlu0 %865
  %867 = vadd.xlane.f32.xlu0 %v805
  %v868 = vpop.xlane.xlu0 %867
  %869 = vadd.xlane.f32.xlu0 %v806
  %v870 = vpop.xlane.xlu0 %869
  %871 = vadd.xlane.f32.xlu0 %v807
  %v872 = vpop.xlane.xlu0 %871
  %873 = vadd.xlane.f32.xlu0 %v808
  %v874 = vpop.xlane.xlu0 %873
  %875 = vadd.xlane.f32.xlu0 %v809
  %v876 = vpop.xlane.xlu0 %875
  %877 = vadd.xlane.f32.xlu0 %v810
  %v878 = vpop.xlane.xlu0 %877
  %879 = vadd.xlane.f32.xlu0 %v811
  %v880 = vpop.xlane.xlu0 %879
  %881 = vadd.xlane.f32.xlu0 %v812
  %v882 = vpop.xlane.xlu0 %881
  %883 = vadd.xlane.f32.xlu0 %v813
  %v884 = vpop.xlane.xlu0 %883
  %885 = vadd.xlane.f32.xlu0 %v814
  %v886 = vpop.xlane.xlu0 %885
  %887 = vadd.xlane.f32.xlu0 %v815
  %v888 = vpop.xlane.xlu0 %887
  %889 = vadd.xlane.f32.xlu0 %v816
  %v890 = vpop.xlane.xlu0 %889
  %891 = vadd.xlane.f32.xlu0 %v817
  %v892 = vpop.xlane.xlu0 %891
  %893 = vadd.xlane.f32.xlu0 %v818
  %v894 = vpop.xlane.xlu0 %893
  %895 = vadd.xlane.f32.xlu0 %v819
  %v896 = vpop.xlane.xlu0 %895
  %897 = vadd.xlane.f32.xlu0 %v820
  %v898 = vpop.xlane.xlu0 %897
  %899 = vadd.xlane.f32.xlu0 %v821
  %v900 = vpop.xlane.xlu0 %899
  %901 = vadd.xlane.f32.xlu0 %v822
  %v902 = vpop.xlane.xlu0 %901
  %903 = vadd.xlane.f32.xlu0 %v823
  %v904 = vpop.xlane.xlu0 %903
  %905 = vadd.xlane.f32.xlu0 %v824
  %v906 = vpop.xlane.xlu0 %905
  %907 = vadd.xlane.f32.xlu0 %v825
  %v908 = vpop.xlane.xlu0 %907
  %909 = vadd.xlane.f32.xlu0 %v826
  %v910 = vpop.xlane.xlu0 %909
  %911 = vadd.xlane.f32.xlu0 %v827
  %v912 = vpop.xlane.xlu0 %911
  %913 = vadd.xlane.f32.xlu0 %v828
  %v914 = vpop.xlane.xlu0 %913
  %915 = vadd.xlane.f32.xlu0 %v829
  %v916 = vpop.xlane.xlu0 %915
  %917 = vadd.xlane.f32.xlu0 %v830
  %v918 = vpop.xlane.xlu0 %917
  %v919 = vmax.f32 %v832, 1e-24
  %v920 = vmax.f32 %v834, 1e-24
  %v921 = vmax.f32 %v836, 1e-24
  %v922 = vmax.f32 %v838, 1e-24
  %v923 = vmax.f32 %v840, 1e-24
  %v924 = vmax.f32 %v842, 1e-24
  %v925 = vmax.f32 %v844, 1e-24
  %v926 = vmax.f32 %v846, 1e-24
  %v927 = vmax.f32 %v848, 1e-24
  %v928 = vmax.f32 %v850, 1e-24
  %v929 = vmax.f32 %v852, 1e-24
  %v930 = vmax.f32 %v854, 1e-24
  %v931 = vmax.f32 %v856, 1e-24
  %v932 = vmax.f32 %v858, 1e-24
  %v933 = vmax.f32 %v860, 1e-24
  %v934 = vmax.f32 %v862, 1e-24
  %v935 = vmax.f32 %v864, 1e-24
  %v936 = vmax.f32 %v866, 1e-24
  %v937 = vmax.f32 %v868, 1e-24
  %v938 = vmax.f32 %v870, 1e-24
  %v939 = vmax.f32 %v872, 1e-24
  %v940 = vmax.f32 %v874, 1e-24
  %v941 = vmax.f32 %v876, 1e-24
  %v942 = vmax.f32 %v878, 1e-24
  %v943 = vmax.f32 %v880, 1e-24
  %v944 = vmax.f32 %v882, 1e-24
  %v945 = vmax.f32 %v884, 1e-24
  %v946 = vmax.f32 %v886, 1e-24
  %v947 = vmax.f32 %v888, 1e-24
  %v948 = vmax.f32 %v890, 1e-24
  %v949 = vmax.f32 %v892, 1e-24
  %v950 = vmax.f32 %v894, 1e-24
  %v951 = vmax.f32 %v896, 1e-24
  %v952 = vmax.f32 %v898, 1e-24
  %v953 = vmax.f32 %v900, 1e-24
  %v954 = vmax.f32 %v902, 1e-24
  %v955 = vmax.f32 %v904, 1e-24
  %v956 = vmax.f32 %v906, 1e-24
  %v957 = vmax.f32 %v908, 1e-24
  %v958 = vmax.f32 %v910, 1e-24
  %v959 = vmax.f32 %v912, 1e-24
  %v960 = vmax.f32 %v914, 1e-24
  %v961 = vmax.f32 %v916, 1e-24
  %v962 = vmax.f32 %v918, 1e-24
  %v963 = vrsqrt.pop %v919
  %v964 = vmul.f32 %v963, %v919
  %v965 = vmul.f32 %v964, %v963
  %v966 = vmul.f32 0.5, %v965
  %v967 = vsub.f32 1.5, %v966
  %v968 = vmul.f32 %v963, %v967
  %vm969 = vweird.f32 %v919
  %vm970 = vweird.f32 %v963
  %vm971 = vmor %vm969, %vm970
  %v972 = vsel %vm971, %v963, %v968
  %v973 = vrsqrt.pop %v920
  %v974 = vmul.f32 %v973, %v920
  %v975 = vmul.f32 %v974, %v973
  %v976 = vmul.f32 0.5, %v975
  %v977 = vsub.f32 1.5, %v976
  %v978 = vmul.f32 %v973, %v977
  %vm979 = vweird.f32 %v920
  %vm980 = vweird.f32 %v973
  %vm981 = vmor %vm979, %vm980
  %v982 = vsel %vm981, %v973, %v978
  %v983 = vrsqrt.pop %v921
  %v984 = vmul.f32 %v983, %v921
  %v985 = vmul.f32 %v984, %v983
  %v986 = vmul.f32 0.5, %v985
  %v987 = vsub.f32 1.5, %v986
  %v988 = vmul.f32 %v983, %v987
  %vm989 = vweird.f32 %v921
  %vm990 = vweird.f32 %v983
  %vm991 = vmor %vm989, %vm990
  %v992 = vsel %vm991, %v983, %v988
  %v993 = vrsqrt.pop %v922
  %v994 = vmul.f32 %v993, %v922
  %v995 = vmul.f32 %v994, %v993
  %v996 = vmul.f32 0.5, %v995
  %v997 = vsub.f32 1.5, %v996
  %v998 = vmul.f32 %v993, %v997
  %vm999 = vweird.f32 %v922
  %vm1000 = vweird.f32 %v993
  %vm1001 = vmor %vm999, %vm1000
  %v1002 = vsel %vm1001, %v993, %v998
  %v1003 = vrsqrt.pop %v923
  %v1004 = vmul.f32 %v1003, %v923
  %v1005 = vmul.f32 %v1004, %v1003
  %v1006 = vmul.f32 0.5, %v1005
  %v1007 = vsub.f32 1.5, %v1006
  %v1008 = vmul.f32 %v1003, %v1007
  %vm1009 = vweird.f32 %v923
  %vm1010 = vweird.f32 %v1003
  %vm1011 = vmor %vm1009, %vm1010
  %v1012 = vsel %vm1011, %v1003, %v1008
  %v1013 = vrsqrt.pop %v924
  %v1014 = vmul.f32 %v1013, %v924
  %v1015 = vmul.f32 %v1014, %v1013
  %v1016 = vmul.f32 0.5, %v1015
  %v1017 = vsub.f32 1.5, %v1016
  %v1018 = vmul.f32 %v1013, %v1017
  %vm1019 = vweird.f32 %v924
  %vm1020 = vweird.f32 %v1013
  %vm1021 = vmor %vm1019, %vm1020
  %v1022 = vsel %vm1021, %v1013, %v1018
  %v1023 = vrsqrt.pop %v925
  %v1024 = vmul.f32 %v1023, %v925
  %v1025 = vmul.f32 %v1024, %v1023
  %v1026 = vmul.f32 0.5, %v1025
  %v1027 = vsub.f32 1.5, %v1026
  %v1028 = vmul.f32 %v1023, %v1027
  %vm1029 = vweird.f32 %v925
  %vm1030 = vweird.f32 %v1023
  %vm1031 = vmor %vm1029, %vm1030
  %v1032 = vsel %vm1031, %v1023, %v1028
  %v1033 = vrsqrt.pop %v926
  %v1034 = vmul.f32 %v1033, %v926
  %v1035 = vmul.f32 %v1034, %v1033
  %v1036 = vmul.f32 0.5, %v1035
  %v1037 = vsub.f32 1.5, %v1036
  %v1038 = vmul.f32 %v1033, %v1037
  %vm1039 = vweird.f32 %v926
  %vm1040 = vweird.f32 %v1033
  %vm1041 = vmor %vm1039, %vm1040
  %v1042 = vsel %vm1041, %v1033, %v1038
  %v1043 = vrsqrt.pop %v927
  %v1044 = vmul.f32 %v1043, %v927
  %v1045 = vmul.f32 %v1044, %v1043
  %v1046 = vmul.f32 0.5, %v1045
  %v1047 = vsub.f32 1.5, %v1046
  %v1048 = vmul.f32 %v1043, %v1047
  %vm1049 = vweird.f32 %v927
  %vm1050 = vweird.f32 %v1043
  %vm1051 = vmor %vm1049, %vm1050
  %v1052 = vsel %vm1051, %v1043, %v1048
  %v1053 = vrsqrt.pop %v928
  %v1054 = vmul.f32 %v1053, %v928
  %v1055 = vmul.f32 %v1054, %v1053
  %v1056 = vmul.f32 0.5, %v1055
  %v1057 = vsub.f32 1.5, %v1056
  %v1058 = vmul.f32 %v1053, %v1057
  %vm1059 = vweird.f32 %v928
  %vm1060 = vweird.f32 %v1053
  %vm1061 = vmor %vm1059, %vm1060
  %v1062 = vsel %vm1061, %v1053, %v1058
  %v1063 = vrsqrt.pop %v929
  %v1064 = vmul.f32 %v1063, %v929
  %v1065 = vmul.f32 %v1064, %v1063
  %v1066 = vmul.f32 0.5, %v1065
  %v1067 = vsub.f32 1.5, %v1066
  %v1068 = vmul.f32 %v1063, %v1067
  %vm1069 = vweird.f32 %v929
  %vm1070 = vweird.f32 %v1063
  %vm1071 = vmor %vm1069, %vm1070
  %v1072 = vsel %vm1071, %v1063, %v1068
  %v1073 = vrsqrt.pop %v930
  %v1074 = vmul.f32 %v1073, %v930
  %v1075 = vmul.f32 %v1074, %v1073
  %v1076 = vmul.f32 0.5, %v1075
  %v1077 = vsub.f32 1.5, %v1076
  %v1078 = vmul.f32 %v1073, %v1077
  %vm1079 = vweird.f32 %v930
  %vm1080 = vweird.f32 %v1073
  %vm1081 = vmor %vm1079, %vm1080
  %v1082 = vsel %vm1081, %v1073, %v1078
  %v1083 = vrsqrt.pop %v931
  %v1084 = vmul.f32 %v1083, %v931
  %v1085 = vmul.f32 %v1084, %v1083
  %v1086 = vmul.f32 0.5, %v1085
  %v1087 = vsub.f32 1.5, %v1086
  %v1088 = vmul.f32 %v1083, %v1087
  %vm1089 = vweird.f32 %v931
  %vm1090 = vweird.f32 %v1083
  %vm1091 = vmor %vm1089, %vm1090
  %v1092 = vsel %vm1091, %v1083, %v1088
  %v1093 = vrsqrt.pop %v932
  %v1094 = vmul.f32 %v1093, %v932
  %v1095 = vmul.f32 %v1094, %v1093
  %v1096 = vmul.f32 0.5, %v1095
  %v1097 = vsub.f32 1.5, %v1096
  %v1098 = vmul.f32 %v1093, %v1097
  %vm1099 = vweird.f32 %v932
  %vm1100 = vweird.f32 %v1093
  %vm1101 = vmor %vm1099, %vm1100
  %v1102 = vsel %vm1101, %v1093, %v1098
  %v1103 = vrsqrt.pop %v933
  %v1104 = vmul.f32 %v1103, %v933
  %v1105 = vmul.f32 %v1104, %v1103
  %v1106 = vmul.f32 0.5, %v1105
  %v1107 = vsub.f32 1.5, %v1106
  %v1108 = vmul.f32 %v1103, %v1107
  %vm1109 = vweird.f32 %v933
  %vm1110 = vweird.f32 %v1103
  %vm1111 = vmor %vm1109, %vm1110
  %v1112 = vsel %vm1111, %v1103, %v1108
  %v1113 = vrsqrt.pop %v934
  %v1114 = vmul.f32 %v1113, %v934
  %v1115 = vmul.f32 %v1114, %v1113
  %v1116 = vmul.f32 0.5, %v1115
  %v1117 = vsub.f32 1.5, %v1116
  %v1118 = vmul.f32 %v1113, %v1117
  %vm1119 = vweird.f32 %v934
  %vm1120 = vweird.f32 %v1113
  %vm1121 = vmor %vm1119, %vm1120
  %v1122 = vsel %vm1121, %v1113, %v1118
  %v1123 = vrsqrt.pop %v935
  %v1124 = vmul.f32 %v1123, %v935
  %v1125 = vmul.f32 %v1124, %v1123
  %v1126 = vmul.f32 0.5, %v1125
  %v1127 = vsub.f32 1.5, %v1126
  %v1128 = vmul.f32 %v1123, %v1127
  %vm1129 = vweird.f32 %v935
  %vm1130 = vweird.f32 %v1123
  %vm1131 = vmor %vm1129, %vm1130
  %v1132 = vsel %vm1131, %v1123, %v1128
  %v1133 = vrsqrt.pop %v936
  %v1134 = vmul.f32 %v1133, %v936
  %v1135 = vmul.f32 %v1134, %v1133
  %v1136 = vmul.f32 0.5, %v1135
  %v1137 = vsub.f32 1.5, %v1136
  %v1138 = vmul.f32 %v1133, %v1137
  %vm1139 = vweird.f32 %v936
  %vm1140 = vweird.f32 %v1133
  %vm1141 = vmor %vm1139, %vm1140
  %v1142 = vsel %vm1141, %v1133, %v1138
  %v1143 = vrsqrt.pop %v937
  %v1144 = vmul.f32 %v1143, %v937
  %v1145 = vmul.f32 %v1144, %v1143
  %v1146 = vmul.f32 0.5, %v1145
  %v1147 = vsub.f32 1.5, %v1146
  %v1148 = vmul.f32 %v1143, %v1147
  %vm1149 = vweird.f32 %v937
  %vm1150 = vweird.f32 %v1143
  %vm1151 = vmor %vm1149, %vm1150
  %v1152 = vsel %vm1151, %v1143, %v1148
  %v1153 = vrsqrt.pop %v938
  %v1154 = vmul.f32 %v1153, %v938
  %v1155 = vmul.f32 %v1154, %v1153
  %v1156 = vmul.f32 0.5, %v1155
  %v1157 = vsub.f32 1.5, %v1156
  %v1158 = vmul.f32 %v1153, %v1157
  %vm1159 = vweird.f32 %v938
  %vm1160 = vweird.f32 %v1153
  %vm1161 = vmor %vm1159, %vm1160
  %v1162 = vsel %vm1161, %v1153, %v1158
  %v1163 = vrsqrt.pop %v939
  %v1164 = vmul.f32 %v1163, %v939
  %v1165 = vmul.f32 %v1164, %v1163
  %v1166 = vmul.f32 0.5, %v1165
  %v1167 = vsub.f32 1.5, %v1166
  %v1168 = vmul.f32 %v1163, %v1167
  %vm1169 = vweird.f32 %v939
  %vm1170 = vweird.f32 %v1163
  %vm1171 = vmor %vm1169, %vm1170
  %v1172 = vsel %vm1171, %v1163, %v1168
  %v1173 = vrsqrt.pop %v940
  %v1174 = vmul.f32 %v1173, %v940
  %v1175 = vmul.f32 %v1174, %v1173
  %v1176 = vmul.f32 0.5, %v1175
  %v1177 = vsub.f32 1.5, %v1176
  %v1178 = vmul.f32 %v1173, %v1177
  %vm1179 = vweird.f32 %v940
  %vm1180 = vweird.f32 %v1173
  %vm1181 = vmor %vm1179, %vm1180
  %v1182 = vsel %vm1181, %v1173, %v1178
  %v1183 = vrsqrt.pop %v941
  %v1184 = vmul.f32 %v1183, %v941
  %v1185 = vmul.f32 %v1184, %v1183
  %v1186 = vmul.f32 0.5, %v1185
  %v1187 = vsub.f32 1.5, %v1186
  %v1188 = vmul.f32 %v1183, %v1187
  %vm1189 = vweird.f32 %v941
  %vm1190 = vweird.f32 %v1183
  %vm1191 = vmor %vm1189, %vm1190
  %v1192 = vsel %vm1191, %v1183, %v1188
  %v1193 = vrsqrt.pop %v942
  %v1194 = vmul.f32 %v1193, %v942
  %v1195 = vmul.f32 %v1194, %v1193
  %v1196 = vmul.f32 0.5, %v1195
  %v1197 = vsub.f32 1.5, %v1196
  %v1198 = vmul.f32 %v1193, %v1197
  %vm1199 = vweird.f32 %v942
  %vm1200 = vweird.f32 %v1193
  %vm1201 = vmor %vm1199, %vm1200
  %v1202 = vsel %vm1201, %v1193, %v1198
  %v1203 = vrsqrt.pop %v943
  %v1204 = vmul.f32 %v1203, %v943
  %v1205 = vmul.f32 %v1204, %v1203
  %v1206 = vmul.f32 0.5, %v1205
  %v1207 = vsub.f32 1.5, %v1206
  %v1208 = vmul.f32 %v1203, %v1207
  %vm1209 = vweird.f32 %v943
  %vm1210 = vweird.f32 %v1203
  %vm1211 = vmor %vm1209, %vm1210
  %v1212 = vsel %vm1211, %v1203, %v1208
  %v1213 = vrsqrt.pop %v944
  %v1214 = vmul.f32 %v1213, %v944
  %v1215 = vmul.f32 %v1214, %v1213
  %v1216 = vmul.f32 0.5, %v1215
  %v1217 = vsub.f32 1.5, %v1216
  %v1218 = vmul.f32 %v1213, %v1217
  %vm1219 = vweird.f32 %v944
  %vm1220 = vweird.f32 %v1213
  %vm1221 = vmor %vm1219, %vm1220
  %v1222 = vsel %vm1221, %v1213, %v1218
  %v1223 = vrsqrt.pop %v945
  %v1224 = vmul.f32 %v1223, %v945
  %v1225 = vmul.f32 %v1224, %v1223
  %v1226 = vmul.f32 0.5, %v1225
  %v1227 = vsub.f32 1.5, %v1226
  %v1228 = vmul.f32 %v1223, %v1227
  %vm1229 = vweird.f32 %v945
  %vm1230 = vweird.f32 %v1223
  %vm1231 = vmor %vm1229, %vm1230
  %v1232 = vsel %vm1231, %v1223, %v1228
  %v1233 = vrsqrt.pop %v946
  %v1234 = vmul.f32 %v1233, %v946
  %v1235 = vmul.f32 %v1234, %v1233
  %v1236 = vmul.f32 0.5, %v1235
  %v1237 = vsub.f32 1.5, %v1236
  %v1238 = vmul.f32 %v1233, %v1237
  %vm1239 = vweird.f32 %v946
  %vm1240 = vweird.f32 %v1233
  %vm1241 = vmor %vm1239, %vm1240
  %v1242 = vsel %vm1241, %v1233, %v1238
  %v1243 = vrsqrt.pop %v947
  %v1244 = vmul.f32 %v1243, %v947
  %v1245 = vmul.f32 %v1244, %v1243
  %v1246 = vmul.f32 0.5, %v1245
  %v1247 = vsub.f32 1.5, %v1246
  %v1248 = vmul.f32 %v1243, %v1247
  %vm1249 = vweird.f32 %v947
  %vm1250 = vweird.f32 %v1243
  %vm1251 = vmor %vm1249, %vm1250
  %v1252 = vsel %vm1251, %v1243, %v1248
  %v1253 = vrsqrt.pop %v948
  %v1254 = vmul.f32 %v1253, %v948
  %v1255 = vmul.f32 %v1254, %v1253
  %v1256 = vmul.f32 0.5, %v1255
  %v1257 = vsub.f32 1.5, %v1256
  %v1258 = vmul.f32 %v1253, %v1257
  %vm1259 = vweird.f32 %v948
  %vm1260 = vweird.f32 %v1253
  %vm1261 = vmor %vm1259, %vm1260
  %v1262 = vsel %vm1261, %v1253, %v1258
  %v1263 = vrsqrt.pop %v949
  %v1264 = vmul.f32 %v1263, %v949
  %v1265 = vmul.f32 %v1264, %v1263
  %v1266 = vmul.f32 0.5, %v1265
  %v1267 = vsub.f32 1.5, %v1266
  %v1268 = vmul.f32 %v1263, %v1267
  %vm1269 = vweird.f32 %v949
  %vm1270 = vweird.f32 %v1263
  %vm1271 = vmor %vm1269, %vm1270
  %v1272 = vsel %vm1271, %v1263, %v1268
  %v1273 = vrsqrt.pop %v950
  %v1274 = vmul.f32 %v1273, %v950
  %v1275 = vmul.f32 %v1274, %v1273
  %v1276 = vmul.f32 0.5, %v1275
  %v1277 = vsub.f32 1.5, %v1276
  %v1278 = vmul.f32 %v1273, %v1277
  %vm1279 = vweird.f32 %v950
  %vm1280 = vweird.f32 %v1273
  %vm1281 = vmor %vm1279, %vm1280
  %v1282 = vsel %vm1281, %v1273, %v1278
  %v1283 = vrsqrt.pop %v951
  %v1284 = vmul.f32 %v1283, %v951
  %v1285 = vmul.f32 %v1284, %v1283
  %v1286 = vmul.f32 0.5, %v1285
  %v1287 = vsub.f32 1.5, %v1286
  %v1288 = vmul.f32 %v1283, %v1287
  %vm1289 = vweird.f32 %v951
  %vm1290 = vweird.f32 %v1283
  %vm1291 = vmor %vm1289, %vm1290
  %v1292 = vsel %vm1291, %v1283, %v1288
  %v1293 = vrsqrt.pop %v952
  %v1294 = vmul.f32 %v1293, %v952
  %v1295 = vmul.f32 %v1294, %v1293
  %v1296 = vmul.f32 0.5, %v1295
  %v1297 = vsub.f32 1.5, %v1296
  %v1298 = vmul.f32 %v1293, %v1297
  %vm1299 = vweird.f32 %v952
  %vm1300 = vweird.f32 %v1293
  %vm1301 = vmor %vm1299, %vm1300
  %v1302 = vsel %vm1301, %v1293, %v1298
  %v1303 = vrsqrt.pop %v953
  %v1304 = vmul.f32 %v1303, %v953
  %v1305 = vmul.f32 %v1304, %v1303
  %v1306 = vmul.f32 0.5, %v1305
  %v1307 = vsub.f32 1.5, %v1306
  %v1308 = vmul.f32 %v1303, %v1307
  %vm1309 = vweird.f32 %v953
  %vm1310 = vweird.f32 %v1303
  %vm1311 = vmor %vm1309, %vm1310
  %v1312 = vsel %vm1311, %v1303, %v1308
  %v1313 = vrsqrt.pop %v954
  %v1314 = vmul.f32 %v1313, %v954
  %v1315 = vmul.f32 %v1314, %v1313
  %v1316 = vmul.f32 0.5, %v1315
  %v1317 = vsub.f32 1.5, %v1316
  %v1318 = vmul.f32 %v1313, %v1317
  %vm1319 = vweird.f32 %v954
  %vm1320 = vweird.f32 %v1313
  %vm1321 = vmor %vm1319, %vm1320
  %v1322 = vsel %vm1321, %v1313, %v1318
  %v1323 = vrsqrt.pop %v955
  %v1324 = vmul.f32 %v1323, %v955
  %v1325 = vmul.f32 %v1324, %v1323
  %v1326 = vmul.f32 0.5, %v1325
  %v1327 = vsub.f32 1.5, %v1326
  %v1328 = vmul.f32 %v1323, %v1327
  %vm1329 = vweird.f32 %v955
  %vm1330 = vweird.f32 %v1323
  %vm1331 = vmor %vm1329, %vm1330
  %v1332 = vsel %vm1331, %v1323, %v1328
  %v1333 = vrsqrt.pop %v956
  %v1334 = vmul.f32 %v1333, %v956
  %v1335 = vmul.f32 %v1334, %v1333
  %v1336 = vmul.f32 0.5, %v1335
  %v1337 = vsub.f32 1.5, %v1336
  %v1338 = vmul.f32 %v1333, %v1337
  %vm1339 = vweird.f32 %v956
  %vm1340 = vweird.f32 %v1333
  %vm1341 = vmor %vm1339, %vm1340
  %v1342 = vsel %vm1341, %v1333, %v1338
  %v1343 = vrsqrt.pop %v957
  %v1344 = vmul.f32 %v1343, %v957
  %v1345 = vmul.f32 %v1344, %v1343
  %v1346 = vmul.f32 0.5, %v1345
  %v1347 = vsub.f32 1.5, %v1346
  %v1348 = vmul.f32 %v1343, %v1347
  %vm1349 = vweird.f32 %v957
  %vm1350 = vweird.f32 %v1343
  %vm1351 = vmor %vm1349, %vm1350
  %v1352 = vsel %vm1351, %v1343, %v1348
  %v1353 = vrsqrt.pop %v958
  %v1354 = vmul.f32 %v1353, %v958
  %v1355 = vmul.f32 %v1354, %v1353
  %v1356 = vmul.f32 0.5, %v1355
  %v1357 = vsub.f32 1.5, %v1356
  %v1358 = vmul.f32 %v1353, %v1357
  %vm1359 = vweird.f32 %v958
  %vm1360 = vweird.f32 %v1353
  %vm1361 = vmor %vm1359, %vm1360
  %v1362 = vsel %vm1361, %v1353, %v1358
  %v1363 = vrsqrt.pop %v959
  %v1364 = vmul.f32 %v1363, %v959
  %v1365 = vmul.f32 %v1364, %v1363
  %v1366 = vmul.f32 0.5, %v1365
  %v1367 = vsub.f32 1.5, %v1366
  %v1368 = vmul.f32 %v1363, %v1367
  %vm1369 = vweird.f32 %v959
  %vm1370 = vweird.f32 %v1363
  %vm1371 = vmor %vm1369, %vm1370
  %v1372 = vsel %vm1371, %v1363, %v1368
  %v1373 = vrsqrt.pop %v960
  %v1374 = vmul.f32 %v1373, %v960
  %v1375 = vmul.f32 %v1374, %v1373
  %v1376 = vmul.f32 0.5, %v1375
  %v1377 = vsub.f32 1.5, %v1376
  %v1378 = vmul.f32 %v1373, %v1377
  %vm1379 = vweird.f32 %v960
  %vm1380 = vweird.f32 %v1373
  %vm1381 = vmor %vm1379, %vm1380
  %v1382 = vsel %vm1381, %v1373, %v1378
  %v1383 = vrsqrt.pop %v961
  %v1384 = vmul.f32 %v1383, %v961
  %v1385 = vmul.f32 %v1384, %v1383
  %v1386 = vmul.f32 0.5, %v1385
  %v1387 = vsub.f32 1.5, %v1386
  %v1388 = vmul.f32 %v1383, %v1387
  %vm1389 = vweird.f32 %v961
  %vm1390 = vweird.f32 %v1383
  %vm1391 = vmor %vm1389, %vm1390
  %v1392 = vsel %vm1391, %v1383, %v1388
  %v1393 = vrsqrt.pop %v962
  %v1394 = vmul.f32 %v1393, %v962
  %v1395 = vmul.f32 %v1394, %v1393
  %v1396 = vmul.f32 0.5, %v1395
  %v1397 = vsub.f32 1.5, %v1396
  %v1398 = vmul.f32 %v1393, %v1397
  %vm1399 = vweird.f32 %v962
  %vm1400 = vweird.f32 %v1393
  %vm1401 = vmor %vm1399, %vm1400
  %v1402 = vsel %vm1401, %v1393, %v1398
  %v1403 = vmul.f32 %v743, %v972
  %v1404 = vmul.f32 %v744, %v982
  %v1405 = vmul.f32 %v745, %v992
  %v1406 = vmul.f32 %v746, %v1002
  %v1407 = vmul.f32 %v747, %v1012
  %v1408 = vmul.f32 %v748, %v1022
  %v1409 = vmul.f32 %v749, %v1032
  %v1410 = vmul.f32 %v750, %v1042
  %v1411 = vmul.f32 %v751, %v1052
  %v1412 = vmul.f32 %v752, %v1062
  %v1413 = vmul.f32 %v753, %v1072
  %v1414 = vmul.f32 %v754, %v1082
  %v1415 = vmul.f32 %v755, %v1092
  %v1416 = vmul.f32 %v756, %v1102
  %v1417 = vmul.f32 %v757, %v1112
  %v1418 = vmul.f32 %v758, %v1122
  %v1419 = vmul.f32 %v759, %v1132
  %v1420 = vmul.f32 %v760, %v1142
  %v1421 = vmul.f32 %v761, %v1152
  %v1422 = vmul.f32 %v762, %v1162
  %v1423 = vmul.f32 %v763, %v1172
  %v1424 = vmul.f32 %v764, %v1182
  %v1425 = vmul.f32 %v765, %v1192
  %v1426 = vmul.f32 %v766, %v1202
  %v1427 = vmul.f32 %v767, %v1212
  %v1428 = vmul.f32 %v768, %v1222
  %v1429 = vmul.f32 %v769, %v1232
  %v1430 = vmul.f32 %v770, %v1242
  %v1431 = vmul.f32 %v771, %v1252
  %v1432 = vmul.f32 %v772, %v1262
  %v1433 = vmul.f32 %v773, %v1272
  %v1434 = vmul.f32 %v774, %v1282
  %v1435 = vmul.f32 %v775, %v1292
  %v1436 = vmul.f32 %v776, %v1302
  %v1437 = vmul.f32 %v777, %v1312
  %v1438 = vmul.f32 %v778, %v1322
  %v1439 = vmul.f32 %v779, %v1332
  %v1440 = vmul.f32 %v780, %v1342
  %v1441 = vmul.f32 %v781, %v1352
  %v1442 = vmul.f32 %v782, %v1362
  %v1443 = vmul.f32 %v783, %v1372
  %v1444 = vmul.f32 %v784, %v1382
  %v1445 = vmul.f32 %v785, %v1392
  %v1446 = vmul.f32 %v786, %v1402
  %v1447 = vpack.c.bf16 %v1403, %v1403
  %v1448 = vpack.c.bf16 %v1404, %v1404
  %v1449 = vpack.c.bf16 %v1405, %v1405
  %v1450 = vpack.c.bf16 %v1406, %v1406
  %v1451 = vpack.c.bf16 %v1407, %v1407
  %v1452 = vpack.c.bf16 %v1408, %v1408
  %v1453 = vpack.c.bf16 %v1409, %v1409
  %v1454 = vpack.c.bf16 %v1410, %v1410
  %v1455 = vpack.c.bf16 %v1411, %v1411
  %v1456 = vpack.c.bf16 %v1412, %v1412
  %v1457 = vpack.c.bf16 %v1413, %v1413
  %v1458 = vpack.c.bf16 %v1414, %v1414
  %v1459 = vpack.c.bf16 %v1415, %v1415
  %v1460 = vpack.c.bf16 %v1416, %v1416
  %v1461 = vpack.c.bf16 %v1417, %v1417
  %v1462 = vpack.c.bf16 %v1418, %v1418
  %v1463 = vpack.c.bf16 %v1419, %v1419
  %v1464 = vpack.c.bf16 %v1420, %v1420
  %v1465 = vpack.c.bf16 %v1421, %v1421
  %v1466 = vpack.c.bf16 %v1422, %v1422
  %v1467 = vpack.c.bf16 %v1423, %v1423
  %v1468 = vpack.c.bf16 %v1424, %v1424
  %v1469 = vpack.c.bf16 %v1425, %v1425
  %v1470 = vpack.c.bf16 %v1426, %v1426
  %v1471 = vpack.c.bf16 %v1427, %v1427
  %v1472 = vpack.c.bf16 %v1428, %v1428
  %v1473 = vpack.c.bf16 %v1429, %v1429
  %v1474 = vpack.c.bf16 %v1430, %v1430
  %v1475 = vpack.c.bf16 %v1431, %v1431
  %v1476 = vpack.c.bf16 %v1432, %v1432
  %v1477 = vpack.c.bf16 %v1433, %v1433
  %v1478 = vpack.c.bf16 %v1434, %v1434
  %v1479 = vpack.c.bf16 %v1435, %v1435
  %v1480 = vpack.c.bf16 %v1436, %v1436
  %v1481 = vpack.c.bf16 %v1437, %v1437
  %v1482 = vpack.c.bf16 %v1438, %v1438
  %v1483 = vpack.c.bf16 %v1439, %v1439
  %v1484 = vpack.c.bf16 %v1440, %v1440
  %v1485 = vpack.c.bf16 %v1441, %v1441
  %v1486 = vpack.c.bf16 %v1442, %v1442
  %v1487 = vpack.c.bf16 %v1443, %v1443
  %v1488 = vpack.c.bf16 %v1444, %v1444
  %v1489 = vpack.c.bf16 %v1445, %v1445
  %v1490 = vpack.c.bf16 %v1446, %v1446
  %v1511 = vunpack.c.l.b16 %v1447
  %v1512 = vunpack.c.l.b16 %v1448
  %v1513 = vunpack.c.l.b16 %v1451
  %v1514 = vunpack.c.l.b16 %v1452
  %v1515 = vunpack.c.l.b16 %v1455
  %v1516 = vunpack.c.l.b16 %v1456
  %v1517 = vunpack.c.l.b16 %v1459
  %v1518 = vunpack.c.l.b16 %v1460
  %v1519 = vunpack.c.l.b16 %v1463
  %v1520 = vunpack.c.l.b16 %v1464
  %v1521 = vunpack.c.l.b16 %v1467
  %v1522 = vunpack.c.l.b16 %v1468
  %v1523 = vunpack.c.l.b16 %v1471
  %v1524 = vunpack.c.l.b16 %v1472
  %v1525 = vunpack.c.l.b16 %v1475
  %v1526 = vunpack.c.l.b16 %v1476
  %v1527 = vunpack.c.l.b16 %v1479
  %v1528 = vunpack.c.l.b16 %v1480
  %v1529 = vunpack.c.l.b16 %v1483
  %v1530 = vunpack.c.l.b16 %v1484
  %v1531 = vpack.c.b16 %v1512, %v1511
  %v1532 = vpack.c.b16 %v1514, %v1513
  %v1533 = vpack.c.b16 %v1516, %v1515
  %v1534 = vpack.c.b16 %v1518, %v1517
  %v1535 = vpack.c.b16 %v1520, %v1519
  %v1536 = vpack.c.b16 %v1522, %v1521
  %v1537 = vpack.c.b16 %v1524, %v1523
  %v1538 = vpack.c.b16 %v1526, %v1525
  %v1539 = vpack.c.b16 %v1528, %v1527
  %v1540 = vpack.c.b16 %v1530, %v1529
  %v1571 = vunpack.c.l.b16 %v1449
  %v1572 = vunpack.c.l.b16 %v1450
  %v1573 = vunpack.c.l.b16 %v1453
  %v1574 = vunpack.c.l.b16 %v1454
  %v1575 = vunpack.c.l.b16 %v1457
  %v1576 = vunpack.c.l.b16 %v1458
  %v1577 = vunpack.c.l.b16 %v1461
  %v1578 = vunpack.c.l.b16 %v1462
  %v1579 = vunpack.c.l.b16 %v1465
  %v1580 = vunpack.c.l.b16 %v1466
  %v1581 = vunpack.c.l.b16 %v1469
  %v1582 = vunpack.c.l.b16 %v1470
  %v1583 = vunpack.c.l.b16 %v1473
  %v1584 = vunpack.c.l.b16 %v1474
  %v1585 = vunpack.c.l.b16 %v1477
  %v1586 = vunpack.c.l.b16 %v1478
  %v1587 = vunpack.c.l.b16 %v1481
  %v1588 = vunpack.c.l.b16 %v1482
  %v1589 = vunpack.c.l.b16 %v1485
  %v1590 = vunpack.c.l.b16 %v1486
  %v1591 = vpack.c.b16 %v1572, %v1571
  %v1592 = vpack.c.b16 %v1574, %v1573
  %v1593 = vpack.c.b16 %v1576, %v1575
  %v1594 = vpack.c.b16 %v1578, %v1577
  %v1595 = vpack.c.b16 %v1580, %v1579
  %v1596 = vpack.c.b16 %v1582, %v1581
  %v1597 = vpack.c.b16 %v1584, %v1583
  %v1598 = vpack.c.b16 %v1586, %v1585
  %v1599 = vpack.c.b16 %v1588, %v1587
  %v1600 = vpack.c.b16 %v1590, %v1589
  %v1613 = vunpack.c.l.b16 %v1487
  %v1614 = vunpack.c.l.b16 %v1488
  %v1615 = vpack.c.b16 %v1614, %v1613
  %v1619 = vunpack.c.l.b16 %v1489
  %v1620 = vunpack.c.l.b16 %v1490
  %v1621 = vpack.c.b16 %v1620, %v1619
  %v1623 = vld [vmem:[%s3] sm:$0xf]
  %v1624 = vld [vmem:[%s3 + $0x4] sm:$0xf]
  %v1625 = vld [vmem:[%s3 + $0x8] sm:$0xf]
  %v1626 = vld [vmem:[%s3 + $0xc] sm:$0xf]
  %v1627 = vld [vmem:[%s3 + $0x10] sm:$0xf]
  %v1628 = vld [vmem:[%s3 + $0x14] sm:$0xf]
  %v1629 = vld [vmem:[%s3 + $0x18] sm:$0xf]
  %v1630 = vld [vmem:[%s3 + $0x1c] sm:$0xf]
  %v1631 = vld [vmem:[%s3 + $0x20] sm:$0xf]
  %v1632 = vld [vmem:[%s3 + $0x24] sm:$0xf]
  %v1633 = vld [vmem:[%s3 + $0x28] sm:$0xf]
  %v1634 = vld [vmem:[%s3 + $0x2c] sm:$0xf]
  %v1635 = vld [vmem:[%s3 + $0x30] sm:$0xf]
  %v1636 = vld [vmem:[%s3 + $0x34] sm:$0xf]
  %v1637 = vld [vmem:[%s3 + $0x38] sm:$0xf]
  %v1638 = vld [vmem:[%s3 + $0x3c] sm:$0xf]
  %v1639 = vld [vmem:[%s3 + $0x40] sm:$0xf]
  %v1640 = vld [vmem:[%s3 + $0x44] sm:$0xf]
  %v1641 = vld [vmem:[%s3 + $0x48] sm:$0xf]
  %v1642 = vld [vmem:[%s3 + $0x4c] sm:$0xf]
  %v1643 = vld [vmem:[%s3 + $0x50] sm:$0xf]
  %v1644 = vld [vmem:[%s3 + $0x54] sm:$0xf]
  %v1645 = vld [vmem:[%s3 + $0x58] sm:$0xf]
  %v1646 = vld [vmem:[%s3 + $0x5c] sm:$0xf]
  %v1647 = vld [vmem:[%s3 + $0x60] sm:$0xf]
  %v1648 = vld [vmem:[%s3 + $0x64] sm:$0xf]
  %v1649 = vld [vmem:[%s3 + $0x68] sm:$0xf]
  %v1650 = vld [vmem:[%s3 + $0x6c] sm:$0xf]
  %v1651 = vld [vmem:[%s3 + $0x70] sm:$0xf]
  %v1652 = vld [vmem:[%s3 + $0x74] sm:$0xf]
  %v1653 = vld [vmem:[%s3 + $0x78] sm:$0xf]
  %v1654 = vld [vmem:[%s3 + $0x7c] sm:$0xf]
  %v1655 = vld [vmem:[%s3 + $0x80] sm:$0xf]
  %v1656 = vld [vmem:[%s3 + $0x84] sm:$0xf]
  %v1657 = vld [vmem:[%s3 + $0x88] sm:$0xf]
  %v1658 = vld [vmem:[%s3 + $0x8c] sm:$0xf]
  %v1659 = vld [vmem:[%s3 + $0x90] sm:$0xf]
  %v1660 = vld [vmem:[%s3 + $0x94] sm:$0xf]
  %v1661 = vld [vmem:[%s3 + $0x98] sm:$0xf]
  %v1662 = vld [vmem:[%s3 + $0x9c] sm:$0xf]
  %v1663 = vld [vmem:[%s3 + $0xa0] sm:$0xf]
  %v1664 = vld [vmem:[%s3 + $0xa4] sm:$0xf]
  %v1665 = vld [vmem:[%s3 + $0xa8] sm:$0xf]
  %v1666 = vld [vmem:[%s3 + $0xac] sm:$0xf]
  %v1667 = vld [vmem:[%s3 + $0xb0] sm:$0xf]
  %v1668 = vld [vmem:[%s3 + $0xb4] sm:$0xf]
  %v1669 = vld [vmem:[%s3 + $0xb8] sm:$0xf]
  %v1670 = vld [vmem:[%s3 + $0xbc] sm:$0xf]
  %v1671 = vld [vmem:[%s3 + $0xc0] sm:$0xf]
  %v1672 = vld [vmem:[%s3 + $0xc4] sm:$0xf]
  %v1673 = vld [vmem:[%s3 + $0xc8] sm:$0xf]
  %v1674 = vld [vmem:[%s3 + $0xcc] sm:$0xf]
  %v1675 = vld [vmem:[%s3 + $0xd0] sm:$0xf]
  %v1676 = vld [vmem:[%s3 + $0xd4] sm:$0xf]
  %v1677 = vld [vmem:[%s3 + $0xd8] sm:$0xf]
  %v1678 = vld [vmem:[%s3 + $0xdc] sm:$0xf]
  %v1679 = vld [vmem:[%s3 + $0xe0] sm:$0xf]
  %v1680 = vld [vmem:[%s3 + $0xe4] sm:$0xf]
  %v1681 = vld [vmem:[%s3 + $0xe8] sm:$0xf]
  %v1682 = vld [vmem:[%s3 + $0xec] sm:$0xf]
  %v1683 = vld [vmem:[%s3 + $0xf0] sm:$0xf]
  %v1684 = vld [vmem:[%s3 + $0xf4] sm:$0xf]
  %v1685 = vld [vmem:[%s3 + $0xf8] sm:$0xf]
  %v1686 = vld [vmem:[%s3 + $0xfc] sm:$0xf]
  %v1687 = vld [vmem:[%s4] sm:$0x1]
  %v1689 = vperm.slane %v1687, 0
  %v1755 = vunpack.c.l.b16 %v1623
  %v1756 = vunpack.c.l.b16 %v1624
  %v1757 = vunpack.c.l.b16 %v1625
  %v1758 = vunpack.c.l.b16 %v1626
  %v1759 = vunpack.c.l.b16 %v1627
  %v1760 = vunpack.c.l.b16 %v1628
  %v1761 = vunpack.c.l.b16 %v1629
  %v1762 = vunpack.c.l.b16 %v1630
  %v1763 = vunpack.c.l.b16 %v1631
  %v1764 = vunpack.c.l.b16 %v1632
  %v1765 = vunpack.c.l.b16 %v1633
  %v1766 = vunpack.c.l.b16 %v1634
  %v1767 = vunpack.c.l.b16 %v1635
  %v1768 = vunpack.c.l.b16 %v1636
  %v1769 = vunpack.c.l.b16 %v1637
  %v1770 = vunpack.c.l.b16 %v1638
  %v1771 = vunpack.c.l.b16 %v1639
  %v1772 = vunpack.c.l.b16 %v1640
  %v1773 = vunpack.c.l.b16 %v1641
  %v1774 = vunpack.c.l.b16 %v1642
  %v1775 = vunpack.c.l.b16 %v1643
  %v1776 = vunpack.c.l.b16 %v1644
  %v1777 = vunpack.c.l.b16 %v1645
  %v1778 = vunpack.c.l.b16 %v1646
  %v1779 = vunpack.c.l.b16 %v1647
  %v1780 = vunpack.c.l.b16 %v1648
  %v1781 = vunpack.c.l.b16 %v1649
  %v1782 = vunpack.c.l.b16 %v1650
  %v1783 = vunpack.c.l.b16 %v1651
  %v1784 = vunpack.c.l.b16 %v1652
  %v1785 = vunpack.c.l.b16 %v1653
  %v1786 = vunpack.c.l.b16 %v1654
  %v1787 = vunpack.c.l.b16 %v1655
  %v1788 = vunpack.c.l.b16 %v1656
  %v1789 = vunpack.c.l.b16 %v1657
  %v1790 = vunpack.c.l.b16 %v1658
  %v1791 = vunpack.c.l.b16 %v1659
  %v1792 = vunpack.c.l.b16 %v1660
  %v1793 = vunpack.c.l.b16 %v1661
  %v1794 = vunpack.c.l.b16 %v1662
  %v1795 = vunpack.c.l.b16 %v1663
  %v1796 = vunpack.c.l.b16 %v1664
  %v1797 = vunpack.c.l.b16 %v1665
  %v1798 = vunpack.c.l.b16 %v1666
  %v1799 = vunpack.c.l.b16 %v1667
  %v1800 = vunpack.c.l.b16 %v1668
  %v1801 = vunpack.c.l.b16 %v1669
  %v1802 = vunpack.c.l.b16 %v1670
  %v1803 = vunpack.c.l.b16 %v1671
  %v1804 = vunpack.c.l.b16 %v1672
  %v1805 = vunpack.c.l.b16 %v1673
  %v1806 = vunpack.c.l.b16 %v1674
  %v1807 = vunpack.c.l.b16 %v1675
  %v1808 = vunpack.c.l.b16 %v1676
  %v1809 = vunpack.c.l.b16 %v1677
  %v1810 = vunpack.c.l.b16 %v1678
  %v1811 = vunpack.c.l.b16 %v1679
  %v1812 = vunpack.c.l.b16 %v1680
  %v1813 = vunpack.c.l.b16 %v1681
  %v1814 = vunpack.c.l.b16 %v1682
  %v1815 = vunpack.c.l.b16 %v1683
  %v1816 = vunpack.c.l.b16 %v1684
  %v1817 = vunpack.c.l.b16 %v1685
  %v1818 = vunpack.c.l.b16 %v1686
  %v1819 = vpack.c.b16 %v1756, %v1755
  %v1820 = vpack.c.b16 %v1758, %v1757
  %v1821 = vpack.c.b16 %v1760, %v1759
  %v1822 = vpack.c.b16 %v1762, %v1761
  %v1823 = vpack.c.b16 %v1764, %v1763
  %v1824 = vpack.c.b16 %v1766, %v1765
  %v1825 = vpack.c.b16 %v1768, %v1767
  %v1826 = vpack.c.b16 %v1770, %v1769
  %v1827 = vpack.c.b16 %v1772, %v1771
  %v1828 = vpack.c.b16 %v1774, %v1773
  %v1829 = vpack.c.b16 %v1776, %v1775
  %v1830 = vpack.c.b16 %v1778, %v1777
  %v1831 = vpack.c.b16 %v1780, %v1779
  %v1832 = vpack.c.b16 %v1782, %v1781
  %v1833 = vpack.c.b16 %v1784, %v1783
  %v1834 = vpack.c.b16 %v1786, %v1785
  %v1835 = vpack.c.b16 %v1788, %v1787
  %v1836 = vpack.c.b16 %v1790, %v1789
  %v1837 = vpack.c.b16 %v1792, %v1791
  %v1838 = vpack.c.b16 %v1794, %v1793
  %v1839 = vpack.c.b16 %v1796, %v1795
  %v1840 = vpack.c.b16 %v1798, %v1797
  %v1841 = vpack.c.b16 %v1800, %v1799
  %v1842 = vpack.c.b16 %v1802, %v1801
  %v1843 = vpack.c.b16 %v1804, %v1803
  %v1844 = vpack.c.b16 %v1806, %v1805
  %v1845 = vpack.c.b16 %v1808, %v1807
  %v1846 = vpack.c.b16 %v1810, %v1809
  %v1847 = vpack.c.b16 %v1812, %v1811
  %v1848 = vpack.c.b16 %v1814, %v1813
  %v1849 = vpack.c.b16 %v1816, %v1815
  %v1850 = vpack.c.b16 %v1818, %v1817
  %1883 = vmatpush.bf16.msra.mxu0 %v1826
  %1884 = vmatpush.bf16.msra.mxu0 %v1825
  %1885 = vmatpush.bf16.msra.mxu0 %v1824
  %1886 = vmatpush.bf16.msra.mxu0 %v1823
  %1887 = vmatpush.bf16.msra.mxu0 %v1822
  %1888 = vmatpush.bf16.msra.mxu0 %v1821
  %1889 = vmatpush.bf16.msra.mxu0 %v1820
  %1890 = vmatpush.bf16.msra.mxu0 %v1819
  %1891 = vmatmul.bf16.gmra.mxu0 %v1531
  %v1892 = vpop.f32.mrf.mxu0
  %v1893 = vadd.f32 %v1689, %v1892
  %v1894 = vpop.f32.mrf.mxu0
  %v1895 = vadd.f32 %v1689, %v1894
  %1896 = vmatmul.bf16.gmra.mxu0 %v1532
  %v1897 = vpop.f32.mrf.mxu0
  %v1898 = vadd.f32 %v1689, %v1897
  %v1899 = vpop.f32.mrf.mxu0
  %v1900 = vadd.f32 %v1689, %v1899
  %1901 = vmatmul.bf16.gmra.mxu0 %v1533
  %v1902 = vpop.f32.mrf.mxu0
  %v1903 = vadd.f32 %v1689, %v1902
  %v1904 = vpop.f32.mrf.mxu0
  %v1905 = vadd.f32 %v1689, %v1904
  %1906 = vmatmul.bf16.gmra.mxu0 %v1534
  %v1907 = vpop.f32.mrf.mxu0
  %v1908 = vadd.f32 %v1689, %v1907
  %v1909 = vpop.f32.mrf.mxu0
  %v1910 = vadd.f32 %v1689, %v1909
  %1911 = vmatmul.bf16.gmra.mxu0 %v1535
  %v1912 = vpop.f32.mrf.mxu0
  %v1913 = vadd.f32 %v1689, %v1912
  %v1914 = vpop.f32.mrf.mxu0
  %v1915 = vadd.f32 %v1689, %v1914
  %1916 = vmatmul.bf16.gmra.mxu0 %v1536
  %v1917 = vpop.f32.mrf.mxu0
  %v1918 = vadd.f32 %v1689, %v1917
  %v1919 = vpop.f32.mrf.mxu0
  %v1920 = vadd.f32 %v1689, %v1919
  %1921 = vmatmul.bf16.gmra.mxu0 %v1537
  %v1922 = vpop.f32.mrf.mxu0
  %v1923 = vadd.f32 %v1689, %v1922
  %v1924 = vpop.f32.mrf.mxu0
  %v1925 = vadd.f32 %v1689, %v1924
  %1926 = vmatmul.bf16.gmra.mxu0 %v1538
  %v1927 = vpop.f32.mrf.mxu0
  %v1928 = vadd.f32 %v1689, %v1927
  %v1929 = vpop.f32.mrf.mxu0
  %v1930 = vadd.f32 %v1689, %v1929
  %1931 = vmatmul.bf16.gmra.mxu0 %v1539
  %v1932 = vpop.f32.mrf.mxu0
  %v1933 = vadd.f32 %v1689, %v1932
  %v1934 = vpop.f32.mrf.mxu0
  %v1935 = vadd.f32 %v1689, %v1934
  %1936 = vmatmul.bf16.gmra.mxu0 %v1540
  %v1937 = vpop.f32.mrf.mxu0
  %v1938 = vadd.f32 %v1689, %v1937
  %v1939 = vpop.f32.mrf.mxu0
  %v1940 = vadd.f32 %v1689, %v1939
  %1941 = vdwg.mxu0
  %1942 = vmatpush.bf16.msra.mxu0 %v1834
  %1943 = vmatpush.bf16.msra.mxu0 %v1833
  %1944 = vmatpush.bf16.msra.mxu0 %v1832
  %1945 = vmatpush.bf16.msra.mxu0 %v1831
  %1946 = vmatpush.bf16.msra.mxu0 %v1830
  %1947 = vmatpush.bf16.msra.mxu0 %v1829
  %1948 = vmatpush.bf16.msra.mxu0 %v1828
  %1949 = vmatpush.bf16.msra.mxu0 %v1827
  %1950 = vmatmul.bf16.gmra.mxu0 %v1591
  %v1951 = vpop.f32.mrf.mxu0
  %v1952 = vadd.f32 %v1893, %v1951
  %v1953 = vpop.f32.mrf.mxu0
  %v1954 = vadd.f32 %v1895, %v1953
  %1955 = vmatmul.bf16.gmra.mxu0 %v1592
  %v1956 = vpop.f32.mrf.mxu0
  %v1957 = vadd.f32 %v1898, %v1956
  %v1958 = vpop.f32.mrf.mxu0
  %v1959 = vadd.f32 %v1900, %v1958
  %1960 = vmatmul.bf16.gmra.mxu0 %v1593
  %v1961 = vpop.f32.mrf.mxu0
  %v1962 = vadd.f32 %v1903, %v1961
  %v1963 = vpop.f32.mrf.mxu0
  %v1964 = vadd.f32 %v1905, %v1963
  %1965 = vmatmul.bf16.gmra.mxu0 %v1594
  %v1966 = vpop.f32.mrf.mxu0
  %v1967 = vadd.f32 %v1908, %v1966
  %v1968 = vpop.f32.mrf.mxu0
  %v1969 = vadd.f32 %v1910, %v1968
  %1970 = vmatmul.bf16.gmra.mxu0 %v1595
  %v1971 = vpop.f32.mrf.mxu0
  %v1972 = vadd.f32 %v1913, %v1971
  %v1973 = vpop.f32.mrf.mxu0
  %v1974 = vadd.f32 %v1915, %v1973
  %1975 = vmatmul.bf16.gmra.mxu0 %v1596
  %v1976 = vpop.f32.mrf.mxu0
  %v1977 = vadd.f32 %v1918, %v1976
  %v1978 = vpop.f32.mrf.mxu0
  %v1979 = vadd.f32 %v1920, %v1978
  %1980 = vmatmul.bf16.gmra.mxu0 %v1597
  %v1981 = vpop.f32.mrf.mxu0
  %v1982 = vadd.f32 %v1923, %v1981
  %v1983 = vpop.f32.mrf.mxu0
  %v1984 = vadd.f32 %v1925, %v1983
  %1985 = vmatmul.bf16.gmra.mxu0 %v1598
  %v1986 = vpop.f32.mrf.mxu0
  %v1987 = vadd.f32 %v1928, %v1986
  %v1988 = vpop.f32.mrf.mxu0
  %v1989 = vadd.f32 %v1930, %v1988
  %1990 = vmatmul.bf16.gmra.mxu0 %v1599
  %v1991 = vpop.f32.mrf.mxu0
  %v1992 = vadd.f32 %v1933, %v1991
  %v1993 = vpop.f32.mrf.mxu0
  %v1994 = vadd.f32 %v1935, %v1993
  %1995 = vmatmul.bf16.gmra.mxu0 %v1600
  %v1996 = vpop.f32.mrf.mxu0
  %v1997 = vadd.f32 %v1938, %v1996
  %v1998 = vpop.f32.mrf.mxu0
  %v1999 = vadd.f32 %v1940, %v1998
  %2000 = vdwg.mxu0
  %2001 = vmatpush.bf16.msra.mxu0 %v1842
  %2002 = vmatpush.bf16.msra.mxu0 %v1841
  %2003 = vmatpush.bf16.msra.mxu0 %v1840
  %2004 = vmatpush.bf16.msra.mxu0 %v1839
  %2005 = vmatpush.bf16.msra.mxu0 %v1838
  %2006 = vmatpush.bf16.msra.mxu0 %v1837
  %2007 = vmatpush.bf16.msra.mxu0 %v1836
  %2008 = vmatpush.bf16.msra.mxu0 %v1835
  %2009 = vmatmul.bf16.gmra.mxu0 %v1532
  %v2010 = vpop.f32.mrf.mxu0
  %v2011 = vadd.f32 %v1952, %v2010
  %v2012 = vpop.f32.mrf.mxu0
  %v2013 = vadd.f32 %v1954, %v2012
  %2014 = vmatmul.bf16.gmra.mxu0 %v1533
  %v2015 = vpop.f32.mrf.mxu0
  %v2016 = vadd.f32 %v1957, %v2015
  %v2017 = vpop.f32.mrf.mxu0
  %v2018 = vadd.f32 %v1959, %v2017
  %2019 = vmatmul.bf16.gmra.mxu0 %v1534
  %v2020 = vpop.f32.mrf.mxu0
  %v2021 = vadd.f32 %v1962, %v2020
  %v2022 = vpop.f32.mrf.mxu0
  %v2023 = vadd.f32 %v1964, %v2022
  %2024 = vmatmul.bf16.gmra.mxu0 %v1535
  %v2025 = vpop.f32.mrf.mxu0
  %v2026 = vadd.f32 %v1967, %v2025
  %v2027 = vpop.f32.mrf.mxu0
  %v2028 = vadd.f32 %v1969, %v2027
  %2029 = vmatmul.bf16.gmra.mxu0 %v1536
  %v2030 = vpop.f32.mrf.mxu0
  %v2031 = vadd.f32 %v1972, %v2030
  %v2032 = vpop.f32.mrf.mxu0
  %v2033 = vadd.f32 %v1974, %v2032
  %2034 = vmatmul.bf16.gmra.mxu0 %v1537
  %v2035 = vpop.f32.mrf.mxu0
  %v2036 = vadd.f32 %v1977, %v2035
  %v2037 = vpop.f32.mrf.mxu0
  %v2038 = vadd.f32 %v1979, %v2037
  %2039 = vmatmul.bf16.gmra.mxu0 %v1538
  %v2040 = vpop.f32.mrf.mxu0
  %v2041 = vadd.f32 %v1982, %v2040
  %v2042 = vpop.f32.mrf.mxu0
  %v2043 = vadd.f32 %v1984, %v2042
  %2044 = vmatmul.bf16.gmra.mxu0 %v1539
  %v2045 = vpop.f32.mrf.mxu0
  %v2046 = vadd.f32 %v1987, %v2045
  %v2047 = vpop.f32.mrf.mxu0
  %v2048 = vadd.f32 %v1989, %v2047
  %2049 = vmatmul.bf16.gmra.mxu0 %v1540
  %v2050 = vpop.f32.mrf.mxu0
  %v2051 = vadd.f32 %v1992, %v2050
  %v2052 = vpop.f32.mrf.mxu0
  %v2053 = vadd.f32 %v1994, %v2052
  %2054 = vmatmul.bf16.gmra.mxu0 %v1615
  %v2055 = vpop.f32.mrf.mxu0
  %v2056 = vadd.f32 %v1997, %v2055
  %v2057 = vpop.f32.mrf.mxu0
  %v2058 = vadd.f32 %v1999, %v2057
  %2059 = vdwg.mxu0
  %2060 = vmatpush.bf16.msra.mxu0 %v1850
  %2061 = vmatpush.bf16.msra.mxu0 %v1849
  %2062 = vmatpush.bf16.msra.mxu0 %v1848
  %2063 = vmatpush.bf16.msra.mxu0 %v1847
  %2064 = vmatpush.bf16.msra.mxu0 %v1846
  %2065 = vmatpush.bf16.msra.mxu0 %v1845
  %2066 = vmatpush.bf16.msra.mxu0 %v1844
  %2067 = vmatpush.bf16.msra.mxu0 %v1843
  %2068 = vmatmul.bf16.gmra.mxu0 %v1592
  %v2069 = vpop.f32.mrf.mxu0
  %v2070 = vadd.f32 %v2011, %v2069
  %v2071 = vpop.f32.mrf.mxu0
  %v2072 = vadd.f32 %v2013, %v2071
  %2073 = vmatmul.bf16.gmra.mxu0 %v1593
  %v2074 = vpop.f32.mrf.mxu0
  %v2075 = vadd.f32 %v2016, %v2074
  %v2076 = vpop.f32.mrf.mxu0
  %v2077 = vadd.f32 %v2018, %v2076
  %2078 = vmatmul.bf16.gmra.mxu0 %v1594
  %v2079 = vpop.f32.mrf.mxu0
  %v2080 = vadd.f32 %v2021, %v2079
  %v2081 = vpop.f32.mrf.mxu0
  %v2082 = vadd.f32 %v2023, %v2081
  %2083 = vmatmul.bf16.gmra.mxu0 %v1595
  %v2084 = vpop.f32.mrf.mxu0
  %v2085 = vadd.f32 %v2026, %v2084
  %v2086 = vpop.f32.mrf.mxu0
  %v2087 = vadd.f32 %v2028, %v2086
  %2088 = vmatmul.bf16.gmra.mxu0 %v1596
  %v2089 = vpop.f32.mrf.mxu0
  %v2090 = vadd.f32 %v2031, %v2089
  %v2091 = vpop.f32.mrf.mxu0
  %v2092 = vadd.f32 %v2033, %v2091
  %2093 = vmatmul.bf16.gmra.mxu0 %v1597
  %v2094 = vpop.f32.mrf.mxu0
  %v2095 = vadd.f32 %v2036, %v2094
  %v2096 = vpop.f32.mrf.mxu0
  %v2097 = vadd.f32 %v2038, %v2096
  %2098 = vmatmul.bf16.gmra.mxu0 %v1598
  %v2099 = vpop.f32.mrf.mxu0
  %v2100 = vadd.f32 %v2041, %v2099
  %v2101 = vpop.f32.mrf.mxu0
  %v2102 = vadd.f32 %v2043, %v2101
  %2103 = vmatmul.bf16.gmra.mxu0 %v1599
  %v2104 = vpop.f32.mrf.mxu0
  %v2105 = vadd.f32 %v2046, %v2104
  %v2106 = vpop.f32.mrf.mxu0
  %v2107 = vadd.f32 %v2048, %v2106
  %2108 = vmatmul.bf16.gmra.mxu0 %v1600
  %v2109 = vpop.f32.mrf.mxu0
  %v2110 = vadd.f32 %v2051, %v2109
  %v2111 = vpop.f32.mrf.mxu0
  %v2112 = vadd.f32 %v2053, %v2111
  %2113 = vmatmul.bf16.gmra.mxu0 %v1621
  %v2114 = vpop.f32.mrf.mxu0
  %v2115 = vadd.f32 %v2056, %v2114
  %v2116 = vpop.f32.mrf.mxu0
  %v2117 = vadd.f32 %v2058, %v2116
  %2118 = vdwg.mxu0
  %v2119 = vmax.f32 %v2070, 0.0
  %v2120 = vmax.f32 %v2072, 0.0
  %v2121 = vmax.f32 %v2075, 0.0
  %v2122 = vmax.f32 %v2077, 0.0
  %v2123 = vmax.f32 %v2080, 0.0
  %v2124 = vmax.f32 %v2082, 0.0
  %v2125 = vmax.f32 %v2085, 0.0
  %v2126 = vmax.f32 %v2087, 0.0
  %v2127 = vmax.f32 %v2090, 0.0
  %v2128 = vmax.f32 %v2092, 0.0
  %v2129 = vmax.f32 %v2095, 0.0
  %v2130 = vmax.f32 %v2097, 0.0
  %v2131 = vmax.f32 %v2100, 0.0
  %v2132 = vmax.f32 %v2102, 0.0
  %v2133 = vmax.f32 %v2105, 0.0
  %v2134 = vmax.f32 %v2107, 0.0
  %v2135 = vmax.f32 %v2110, 0.0
  %v2136 = vmax.f32 %v2112, 0.0
  %v2137 = vmax.f32 %v2115, 0.0
  %v2138 = vmax.f32 %v2117, 0.0
  %v2139 = vmul.f32 %v2119, %v2119
  %v2140 = vmul.f32 %v2120, %v2120
  %v2141 = vmul.f32 %v2121, %v2121
  %v2142 = vmul.f32 %v2122, %v2122
  %v2143 = vmul.f32 %v2123, %v2123
  %v2144 = vmul.f32 %v2124, %v2124
  %v2145 = vmul.f32 %v2125, %v2125
  %v2146 = vmul.f32 %v2126, %v2126
  %v2147 = vmul.f32 %v2127, %v2127
  %v2148 = vmul.f32 %v2128, %v2128
  %v2149 = vmul.f32 %v2129, %v2129
  %v2150 = vmul.f32 %v2130, %v2130
  %v2151 = vmul.f32 %v2131, %v2131
  %v2152 = vmul.f32 %v2132, %v2132
  %v2153 = vmul.f32 %v2133, %v2133
  %v2154 = vmul.f32 %v2134, %v2134
  %v2155 = vmul.f32 %v2135, %v2135
  %v2156 = vmul.f32 %v2136, %v2136
  %v2157 = vmul.f32 %v2137, %v2137
  %v2158 = vmul.f32 %v2138, %v2138
  %vm2159 = vcmask 523264
  %v2160 = vsel %vm2159, %v2139, 0.0
  %2161 = vadd.xlane.f32.xlu0 %v2160
  %v2162 = vpop.xlane.xlu0 %2161
  %v2163 = vsel %vm2159, %v2140, 0.0
  %2164 = vadd.xlane.f32.xlu0 %v2163
  %v2165 = vpop.xlane.xlu0 %2164
  %v2166 = vsel %vm2159, %v2141, 0.0
  %2167 = vadd.xlane.f32.xlu0 %v2166
  %v2168 = vpop.xlane.xlu0 %2167
  %v2169 = vsel %vm2159, %v2142, 0.0
  %2170 = vadd.xlane.f32.xlu0 %v2169
  %v2171 = vpop.xlane.xlu0 %2170
  %v2172 = vsel %vm2159, %v2143, 0.0
  %2173 = vadd.xlane.f32.xlu0 %v2172
  %v2174 = vpop.xlane.xlu0 %2173
  %v2175 = vsel %vm2159, %v2144, 0.0
  %2176 = vadd.xlane.f32.xlu0 %v2175
  %v2177 = vpop.xlane.xlu0 %2176
  %v2178 = vsel %vm2159, %v2145, 0.0
  %2179 = vadd.xlane.f32.xlu0 %v2178
  %v2180 = vpop.xlane.xlu0 %2179
  %v2181 = vsel %vm2159, %v2146, 0.0
  %2182 = vadd.xlane.f32.xlu0 %v2181
  %v2183 = vpop.xlane.xlu0 %2182
  %v2184 = vsel %vm2159, %v2147, 0.0
  %2185 = vadd.xlane.f32.xlu0 %v2184
  %v2186 = vpop.xlane.xlu0 %2185
  %v2187 = vsel %vm2159, %v2148, 0.0
  %2188 = vadd.xlane.f32.xlu0 %v2187
  %v2189 = vpop.xlane.xlu0 %2188
  %v2190 = vsel %vm2159, %v2149, 0.0
  %2191 = vadd.xlane.f32.xlu0 %v2190
  %v2192 = vpop.xlane.xlu0 %2191
  %v2193 = vsel %vm2159, %v2150, 0.0
  %2194 = vadd.xlane.f32.xlu0 %v2193
  %v2195 = vpop.xlane.xlu0 %2194
  %v2196 = vsel %vm2159, %v2151, 0.0
  %2197 = vadd.xlane.f32.xlu0 %v2196
  %v2198 = vpop.xlane.xlu0 %2197
  %v2199 = vsel %vm2159, %v2152, 0.0
  %2200 = vadd.xlane.f32.xlu0 %v2199
  %v2201 = vpop.xlane.xlu0 %2200
  %v2202 = vsel %vm2159, %v2153, 0.0
  %2203 = vadd.xlane.f32.xlu0 %v2202
  %v2204 = vpop.xlane.xlu0 %2203
  %v2205 = vsel %vm2159, %v2154, 0.0
  %2206 = vadd.xlane.f32.xlu0 %v2205
  %v2207 = vpop.xlane.xlu0 %2206
  %v2208 = vsel %vm2159, %v2155, 0.0
  %2209 = vadd.xlane.f32.xlu0 %v2208
  %v2210 = vpop.xlane.xlu0 %2209
  %v2211 = vsel %vm2159, %v2156, 0.0
  %2212 = vadd.xlane.f32.xlu0 %v2211
  %v2213 = vpop.xlane.xlu0 %2212
  %v2214 = vsel %vm2159, %v2157, 0.0
  %2215 = vadd.xlane.f32.xlu0 %v2214
  %v2216 = vpop.xlane.xlu0 %2215
  %v2217 = vsel %vm2159, %v2158, 0.0
  %2218 = vadd.xlane.f32.xlu0 %v2217
  %v2219 = vpop.xlane.xlu0 %2218
  %v2220 = vmax.f32 %v2162, 1e-24
  %v2221 = vmax.f32 %v2165, 1e-24
  %v2222 = vmax.f32 %v2168, 1e-24
  %v2223 = vmax.f32 %v2171, 1e-24
  %v2224 = vmax.f32 %v2174, 1e-24
  %v2225 = vmax.f32 %v2177, 1e-24
  %v2226 = vmax.f32 %v2180, 1e-24
  %v2227 = vmax.f32 %v2183, 1e-24
  %v2228 = vmax.f32 %v2186, 1e-24
  %v2229 = vmax.f32 %v2189, 1e-24
  %v2230 = vmax.f32 %v2192, 1e-24
  %v2231 = vmax.f32 %v2195, 1e-24
  %v2232 = vmax.f32 %v2198, 1e-24
  %v2233 = vmax.f32 %v2201, 1e-24
  %v2234 = vmax.f32 %v2204, 1e-24
  %v2235 = vmax.f32 %v2207, 1e-24
  %v2236 = vmax.f32 %v2210, 1e-24
  %v2237 = vmax.f32 %v2213, 1e-24
  %v2238 = vmax.f32 %v2216, 1e-24
  %v2239 = vmax.f32 %v2219, 1e-24
  %v2240 = vrsqrt.pop %v2220
  %v2241 = vmul.f32 %v2240, %v2220
  %v2242 = vmul.f32 %v2241, %v2240
  %v2243 = vmul.f32 0.5, %v2242
  %v2244 = vsub.f32 1.5, %v2243
  %v2245 = vmul.f32 %v2240, %v2244
  %vm2246 = vweird.f32 %v2220
  %vm2247 = vweird.f32 %v2240
  %vm2248 = vmor %vm2246, %vm2247
  %v2249 = vsel %vm2248, %v2240, %v2245
  %v2250 = vrsqrt.pop %v2221
  %v2251 = vmul.f32 %v2250, %v2221
  %v2252 = vmul.f32 %v2251, %v2250
  %v2253 = vmul.f32 0.5, %v2252
  %v2254 = vsub.f32 1.5, %v2253
  %v2255 = vmul.f32 %v2250, %v2254
  %vm2256 = vweird.f32 %v2221
  %vm2257 = vweird.f32 %v2250
  %vm2258 = vmor %vm2256, %vm2257
  %v2259 = vsel %vm2258, %v2250, %v2255
  %v2260 = vrsqrt.pop %v2222
  %v2261 = vmul.f32 %v2260, %v2222
  %v2262 = vmul.f32 %v2261, %v2260
  %v2263 = vmul.f32 0.5, %v2262
  %v2264 = vsub.f32 1.5, %v2263
  %v2265 = vmul.f32 %v2260, %v2264
  %vm2266 = vweird.f32 %v2222
  %vm2267 = vweird.f32 %v2260
  %vm2268 = vmor %vm2266, %vm2267
  %v2269 = vsel %vm2268, %v2260, %v2265
  %v2270 = vrsqrt.pop %v2223
  %v2271 = vmul.f32 %v2270, %v2223
  %v2272 = vmul.f32 %v2271, %v2270
  %v2273 = vmul.f32 0.5, %v2272
  %v2274 = vsub.f32 1.5, %v2273
  %v2275 = vmul.f32 %v2270, %v2274
  %vm2276 = vweird.f32 %v2223
  %vm2277 = vweird.f32 %v2270
  %vm2278 = vmor %vm2276, %vm2277
  %v2279 = vsel %vm2278, %v2270, %v2275
  %v2280 = vrsqrt.pop %v2224
  %v2281 = vmul.f32 %v2280, %v2224
  %v2282 = vmul.f32 %v2281, %v2280
  %v2283 = vmul.f32 0.5, %v2282
  %v2284 = vsub.f32 1.5, %v2283
  %v2285 = vmul.f32 %v2280, %v2284
  %vm2286 = vweird.f32 %v2224
  %vm2287 = vweird.f32 %v2280
  %vm2288 = vmor %vm2286, %vm2287
  %v2289 = vsel %vm2288, %v2280, %v2285
  %v2290 = vrsqrt.pop %v2225
  %v2291 = vmul.f32 %v2290, %v2225
  %v2292 = vmul.f32 %v2291, %v2290
  %v2293 = vmul.f32 0.5, %v2292
  %v2294 = vsub.f32 1.5, %v2293
  %v2295 = vmul.f32 %v2290, %v2294
  %vm2296 = vweird.f32 %v2225
  %vm2297 = vweird.f32 %v2290
  %vm2298 = vmor %vm2296, %vm2297
  %v2299 = vsel %vm2298, %v2290, %v2295
  %v2300 = vrsqrt.pop %v2226
  %v2301 = vmul.f32 %v2300, %v2226
  %v2302 = vmul.f32 %v2301, %v2300
  %v2303 = vmul.f32 0.5, %v2302
  %v2304 = vsub.f32 1.5, %v2303
  %v2305 = vmul.f32 %v2300, %v2304
  %vm2306 = vweird.f32 %v2226
  %vm2307 = vweird.f32 %v2300
  %vm2308 = vmor %vm2306, %vm2307
  %v2309 = vsel %vm2308, %v2300, %v2305
  %v2310 = vrsqrt.pop %v2227
  %v2311 = vmul.f32 %v2310, %v2227
  %v2312 = vmul.f32 %v2311, %v2310
  %v2313 = vmul.f32 0.5, %v2312
  %v2314 = vsub.f32 1.5, %v2313
  %v2315 = vmul.f32 %v2310, %v2314
  %vm2316 = vweird.f32 %v2227
  %vm2317 = vweird.f32 %v2310
  %vm2318 = vmor %vm2316, %vm2317
  %v2319 = vsel %vm2318, %v2310, %v2315
  %v2320 = vrsqrt.pop %v2228
  %v2321 = vmul.f32 %v2320, %v2228
  %v2322 = vmul.f32 %v2321, %v2320
  %v2323 = vmul.f32 0.5, %v2322
  %v2324 = vsub.f32 1.5, %v2323
  %v2325 = vmul.f32 %v2320, %v2324
  %vm2326 = vweird.f32 %v2228
  %vm2327 = vweird.f32 %v2320
  %vm2328 = vmor %vm2326, %vm2327
  %v2329 = vsel %vm2328, %v2320, %v2325
  %v2330 = vrsqrt.pop %v2229
  %v2331 = vmul.f32 %v2330, %v2229
  %v2332 = vmul.f32 %v2331, %v2330
  %v2333 = vmul.f32 0.5, %v2332
  %v2334 = vsub.f32 1.5, %v2333
  %v2335 = vmul.f32 %v2330, %v2334
  %vm2336 = vweird.f32 %v2229
  %vm2337 = vweird.f32 %v2330
  %vm2338 = vmor %vm2336, %vm2337
  %v2339 = vsel %vm2338, %v2330, %v2335
  %v2340 = vrsqrt.pop %v2230
  %v2341 = vmul.f32 %v2340, %v2230
  %v2342 = vmul.f32 %v2341, %v2340
  %v2343 = vmul.f32 0.5, %v2342
  %v2344 = vsub.f32 1.5, %v2343
  %v2345 = vmul.f32 %v2340, %v2344
  %vm2346 = vweird.f32 %v2230
  %vm2347 = vweird.f32 %v2340
  %vm2348 = vmor %vm2346, %vm2347
  %v2349 = vsel %vm2348, %v2340, %v2345
  %v2350 = vrsqrt.pop %v2231
  %v2351 = vmul.f32 %v2350, %v2231
  %v2352 = vmul.f32 %v2351, %v2350
  %v2353 = vmul.f32 0.5, %v2352
  %v2354 = vsub.f32 1.5, %v2353
  %v2355 = vmul.f32 %v2350, %v2354
  %vm2356 = vweird.f32 %v2231
  %vm2357 = vweird.f32 %v2350
  %vm2358 = vmor %vm2356, %vm2357
  %v2359 = vsel %vm2358, %v2350, %v2355
  %v2360 = vrsqrt.pop %v2232
  %v2361 = vmul.f32 %v2360, %v2232
  %v2362 = vmul.f32 %v2361, %v2360
  %v2363 = vmul.f32 0.5, %v2362
  %v2364 = vsub.f32 1.5, %v2363
  %v2365 = vmul.f32 %v2360, %v2364
  %vm2366 = vweird.f32 %v2232
  %vm2367 = vweird.f32 %v2360
  %vm2368 = vmor %vm2366, %vm2367
  %v2369 = vsel %vm2368, %v2360, %v2365
  %v2370 = vrsqrt.pop %v2233
  %v2371 = vmul.f32 %v2370, %v2233
  %v2372 = vmul.f32 %v2371, %v2370
  %v2373 = vmul.f32 0.5, %v2372
  %v2374 = vsub.f32 1.5, %v2373
  %v2375 = vmul.f32 %v2370, %v2374
  %vm2376 = vweird.f32 %v2233
  %vm2377 = vweird.f32 %v2370
  %vm2378 = vmor %vm2376, %vm2377
  %v2379 = vsel %vm2378, %v2370, %v2375
  %v2380 = vrsqrt.pop %v2234
  %v2381 = vmul.f32 %v2380, %v2234
  %v2382 = vmul.f32 %v2381, %v2380
  %v2383 = vmul.f32 0.5, %v2382
  %v2384 = vsub.f32 1.5, %v2383
  %v2385 = vmul.f32 %v2380, %v2384
  %vm2386 = vweird.f32 %v2234
  %vm2387 = vweird.f32 %v2380
  %vm2388 = vmor %vm2386, %vm2387
  %v2389 = vsel %vm2388, %v2380, %v2385
  %v2390 = vrsqrt.pop %v2235
  %v2391 = vmul.f32 %v2390, %v2235
  %v2392 = vmul.f32 %v2391, %v2390
  %v2393 = vmul.f32 0.5, %v2392
  %v2394 = vsub.f32 1.5, %v2393
  %v2395 = vmul.f32 %v2390, %v2394
  %vm2396 = vweird.f32 %v2235
  %vm2397 = vweird.f32 %v2390
  %vm2398 = vmor %vm2396, %vm2397
  %v2399 = vsel %vm2398, %v2390, %v2395
  %v2400 = vrsqrt.pop %v2236
  %v2401 = vmul.f32 %v2400, %v2236
  %v2402 = vmul.f32 %v2401, %v2400
  %v2403 = vmul.f32 0.5, %v2402
  %v2404 = vsub.f32 1.5, %v2403
  %v2405 = vmul.f32 %v2400, %v2404
  %vm2406 = vweird.f32 %v2236
  %vm2407 = vweird.f32 %v2400
  %vm2408 = vmor %vm2406, %vm2407
  %v2409 = vsel %vm2408, %v2400, %v2405
  %v2410 = vrsqrt.pop %v2237
  %v2411 = vmul.f32 %v2410, %v2237
  %v2412 = vmul.f32 %v2411, %v2410
  %v2413 = vmul.f32 0.5, %v2412
  %v2414 = vsub.f32 1.5, %v2413
  %v2415 = vmul.f32 %v2410, %v2414
  %vm2416 = vweird.f32 %v2237
  %vm2417 = vweird.f32 %v2410
  %vm2418 = vmor %vm2416, %vm2417
  %v2419 = vsel %vm2418, %v2410, %v2415
  %v2420 = vrsqrt.pop %v2238
  %v2421 = vmul.f32 %v2420, %v2238
  %v2422 = vmul.f32 %v2421, %v2420
  %v2423 = vmul.f32 0.5, %v2422
  %v2424 = vsub.f32 1.5, %v2423
  %v2425 = vmul.f32 %v2420, %v2424
  %vm2426 = vweird.f32 %v2238
  %vm2427 = vweird.f32 %v2420
  %vm2428 = vmor %vm2426, %vm2427
  %v2429 = vsel %vm2428, %v2420, %v2425
  %v2430 = vrsqrt.pop %v2239
  %v2431 = vmul.f32 %v2430, %v2239
  %v2432 = vmul.f32 %v2431, %v2430
  %v2433 = vmul.f32 0.5, %v2432
  %v2434 = vsub.f32 1.5, %v2433
  %v2435 = vmul.f32 %v2430, %v2434
  %vm2436 = vweird.f32 %v2239
  %vm2437 = vweird.f32 %v2430
  %vm2438 = vmor %vm2436, %vm2437
  %v2439 = vsel %vm2438, %v2430, %v2435
  %v2440 = vmul.f32 %v2119, %v2249
  %v2441 = vmul.f32 %v2120, %v2259
  %v2442 = vmul.f32 %v2121, %v2269
  %v2443 = vmul.f32 %v2122, %v2279
  %v2444 = vmul.f32 %v2123, %v2289
  %v2445 = vmul.f32 %v2124, %v2299
  %v2446 = vmul.f32 %v2125, %v2309
  %v2447 = vmul.f32 %v2126, %v2319
  %v2448 = vmul.f32 %v2127, %v2329
  %v2449 = vmul.f32 %v2128, %v2339
  %v2450 = vmul.f32 %v2129, %v2349
  %v2451 = vmul.f32 %v2130, %v2359
  %v2452 = vmul.f32 %v2131, %v2369
  %v2453 = vmul.f32 %v2132, %v2379
  %v2454 = vmul.f32 %v2133, %v2389
  %v2455 = vmul.f32 %v2134, %v2399
  %v2456 = vmul.f32 %v2135, %v2409
  %v2457 = vmul.f32 %v2136, %v2419
  %v2458 = vmul.f32 %v2137, %v2429
  %v2459 = vmul.f32 %v2138, %v2439
  %v2460 = vpack.c.bf16 %v2440, %v2440
  %v2461 = vpack.c.bf16 %v2441, %v2441
  %v2462 = vpack.c.bf16 %v2442, %v2442
  %v2463 = vpack.c.bf16 %v2443, %v2443
  %v2464 = vpack.c.bf16 %v2444, %v2444
  %v2465 = vpack.c.bf16 %v2445, %v2445
  %v2466 = vpack.c.bf16 %v2446, %v2446
  %v2467 = vpack.c.bf16 %v2447, %v2447
  %v2468 = vpack.c.bf16 %v2448, %v2448
  %v2469 = vpack.c.bf16 %v2449, %v2449
  %v2470 = vpack.c.bf16 %v2450, %v2450
  %v2471 = vpack.c.bf16 %v2451, %v2451
  %v2472 = vpack.c.bf16 %v2452, %v2452
  %v2473 = vpack.c.bf16 %v2453, %v2453
  %v2474 = vpack.c.bf16 %v2454, %v2454
  %v2475 = vpack.c.bf16 %v2455, %v2455
  %v2476 = vpack.c.bf16 %v2456, %v2456
  %v2477 = vpack.c.bf16 %v2457, %v2457
  %v2478 = vpack.c.bf16 %v2458, %v2458
  %v2479 = vpack.c.bf16 %v2459, %v2459
  %v2490 = vunpack.c.l.b16 %v2460
  %v2491 = vunpack.c.l.b16 %v2461
  %v2492 = vunpack.c.l.b16 %v2464
  %v2493 = vunpack.c.l.b16 %v2465
  %v2494 = vunpack.c.l.b16 %v2468
  %v2495 = vunpack.c.l.b16 %v2469
  %v2496 = vunpack.c.l.b16 %v2472
  %v2497 = vunpack.c.l.b16 %v2473
  %v2498 = vunpack.c.l.b16 %v2476
  %v2499 = vunpack.c.l.b16 %v2477
  %v2500 = vpack.c.b16 %v2491, %v2490
  %v2501 = vpack.c.b16 %v2493, %v2492
  %v2502 = vpack.c.b16 %v2495, %v2494
  %v2503 = vpack.c.b16 %v2497, %v2496
  %v2504 = vpack.c.b16 %v2499, %v2498
  %v2515 = vunpack.c.l.b16 %v2462
  %v2516 = vunpack.c.l.b16 %v2463
  %v2517 = vunpack.c.l.b16 %v2466
  %v2518 = vunpack.c.l.b16 %v2467
  %v2519 = vunpack.c.l.b16 %v2470
  %v2520 = vunpack.c.l.b16 %v2471
  %v2521 = vunpack.c.l.b16 %v2474
  %v2522 = vunpack.c.l.b16 %v2475
  %v2523 = vunpack.c.l.b16 %v2478
  %v2524 = vunpack.c.l.b16 %v2479
  %v2525 = vpack.c.b16 %v2516, %v2515
  %v2526 = vpack.c.b16 %v2518, %v2517
  %v2527 = vpack.c.b16 %v2520, %v2519
  %v2528 = vpack.c.b16 %v2522, %v2521
  %v2529 = vpack.c.b16 %v2524, %v2523
  %2530 = vrot.lane.b32.xlu0 %v2525, 64
  %v2531 = vpop.permute.xlu0 %2530
  %2532 = vrot.lane.b32.xlu0 %v2526, 64
  %v2533 = vpop.permute.xlu0 %2532
  %2534 = vrot.lane.b32.xlu0 %v2527, 64
  %v2535 = vpop.permute.xlu0 %2534
  %2536 = vrot.lane.b32.xlu0 %v2528, 64
  %v2537 = vpop.permute.xlu0 %2536
  %2538 = vrot.lane.b32.xlu0 %v2529, 64
  %v2539 = vpop.permute.xlu0 %2538
  %v2542 = vsel %vm2159, %v2500, %v2531
  %v2546 = vsel %vm2159, %v2501, %v2533
  %v2550 = vsel %vm2159, %v2502, %v2535
  %v2554 = vsel %vm2159, %v2503, %v2537
  %v2558 = vsel %vm2159, %v2504, %v2539
  %v2560 = vld [vmem:[%s5] sm:$0xf]
  %v2561 = vld [vmem:[%s5 + $0x4] sm:$0xf]
  %v2562 = vld [vmem:[%s5 + $0x8] sm:$0xf]
  %v2563 = vld [vmem:[%s5 + $0xc] sm:$0xf]
  %v2564 = vld [vmem:[%s5 + $0x10] sm:$0xf]
  %v2565 = vld [vmem:[%s5 + $0x14] sm:$0xf]
  %v2566 = vld [vmem:[%s5 + $0x18] sm:$0xf]
  %v2567 = vld [vmem:[%s5 + $0x1c] sm:$0xf]
  %v2568 = vld [vmem:[%s5 + $0x20] sm:$0xf]
  %v2569 = vld [vmem:[%s5 + $0x24] sm:$0xf]
  %v2570 = vld [vmem:[%s5 + $0x28] sm:$0xf]
  %v2571 = vld [vmem:[%s5 + $0x2c] sm:$0xf]
  %v2572 = vld [vmem:[%s5 + $0x30] sm:$0xf]
  %v2573 = vld [vmem:[%s5 + $0x34] sm:$0xf]
  %v2574 = vld [vmem:[%s5 + $0x38] sm:$0xf]
  %v2575 = vld [vmem:[%s5 + $0x3c] sm:$0xf]
  %v2576 = vld [vmem:[%s6] sm:$0x1]
  %v2578 = vperm.slane %v2576, 0
  %v2596 = vunpack.c.l.b16 %v2560
  %v2597 = vunpack.c.l.b16 %v2561
  %v2598 = vunpack.c.l.b16 %v2562
  %v2599 = vunpack.c.l.b16 %v2563
  %v2600 = vunpack.c.l.b16 %v2564
  %v2601 = vunpack.c.l.b16 %v2565
  %v2602 = vunpack.c.l.b16 %v2566
  %v2603 = vunpack.c.l.b16 %v2567
  %v2604 = vunpack.c.l.b16 %v2568
  %v2605 = vunpack.c.l.b16 %v2569
  %v2606 = vunpack.c.l.b16 %v2570
  %v2607 = vunpack.c.l.b16 %v2571
  %v2608 = vunpack.c.l.b16 %v2572
  %v2609 = vunpack.c.l.b16 %v2573
  %v2610 = vunpack.c.l.b16 %v2574
  %v2611 = vunpack.c.l.b16 %v2575
  %v2612 = vpack.c.b16 %v2597, %v2596
  %v2613 = vpack.c.b16 %v2599, %v2598
  %v2614 = vpack.c.b16 %v2601, %v2600
  %v2615 = vpack.c.b16 %v2603, %v2602
  %v2616 = vpack.c.b16 %v2605, %v2604
  %v2617 = vpack.c.b16 %v2607, %v2606
  %v2618 = vpack.c.b16 %v2609, %v2608
  %v2619 = vpack.c.b16 %v2611, %v2610
  %2628 = vmatpush.bf16.msra.mxu0 %v2619
  %2629 = vmatpush.bf16.msra.mxu0 %v2618
  %2630 = vmatpush.bf16.msra.mxu0 %v2617
  %2631 = vmatpush.bf16.msra.mxu0 %v2616
  %2632 = vmatpush.bf16.msra.mxu0 %v2615
  %2633 = vmatpush.bf16.msra.mxu0 %v2614
  %2634 = vmatpush.bf16.msra.mxu0 %v2613
  %2635 = vmatpush.bf16.msra.mxu0 %v2612
  %2636 = vmatmul.bf16.gmra.mxu0 %v2542
  %v2637 = vpop.f32.mrf.mxu0
  %v2638 = vadd.f32 %v2578, %v2637
  %v2639 = vpop.f32.mrf.mxu0
  %v2640 = vadd.f32 %v2578, %v2639
  %2641 = vmatmul.bf16.gmra.mxu0 %v2546
  %v2642 = vpop.f32.mrf.mxu0
  %v2643 = vadd.f32 %v2578, %v2642
  %v2644 = vpop.f32.mrf.mxu0
  %v2645 = vadd.f32 %v2578, %v2644
  %2646 = vmatmul.bf16.gmra.mxu0 %v2550
  %v2647 = vpop.f32.mrf.mxu0
  %v2648 = vadd.f32 %v2578, %v2647
  %v2649 = vpop.f32.mrf.mxu0
  %v2650 = vadd.f32 %v2578, %v2649
  %2651 = vmatmul.bf16.gmra.mxu0 %v2554
  %v2652 = vpop.f32.mrf.mxu0
  %v2653 = vadd.f32 %v2578, %v2652
  %v2654 = vpop.f32.mrf.mxu0
  %v2655 = vadd.f32 %v2578, %v2654
  %2656 = vmatmul.bf16.gmra.mxu0 %v2558
  %v2657 = vpop.f32.mrf.mxu0
  %v2658 = vadd.f32 %v2578, %v2657
  %v2659 = vpop.f32.mrf.mxu0
  %v2660 = vadd.f32 %v2578, %v2659
  %2661 = vdwg.mxu0
  %v2662 = vmax.f32 %v2638, 0.0
  %v2663 = vmax.f32 %v2640, 0.0
  %v2664 = vmax.f32 %v2643, 0.0
  %v2665 = vmax.f32 %v2645, 0.0
  %v2666 = vmax.f32 %v2648, 0.0
  %v2667 = vmax.f32 %v2650, 0.0
  %v2668 = vmax.f32 %v2653, 0.0
  %v2669 = vmax.f32 %v2655, 0.0
  %v2670 = vmax.f32 %v2658, 0.0
  %v2671 = vmax.f32 %v2660, 0.0
  %v2672 = vmul.f32 %v2662, %v2662
  %v2673 = vmul.f32 %v2663, %v2663
  %v2674 = vmul.f32 %v2664, %v2664
  %v2675 = vmul.f32 %v2665, %v2665
  %v2676 = vmul.f32 %v2666, %v2666
  %v2677 = vmul.f32 %v2667, %v2667
  %v2678 = vmul.f32 %v2668, %v2668
  %v2679 = vmul.f32 %v2669, %v2669
  %v2680 = vmul.f32 %v2670, %v2670
  %v2681 = vmul.f32 %v2671, %v2671
  %v2682 = vsel %vm579, %v2672, 0.0
  %2683 = vadd.xlane.f32.xlu0 %v2682
  %v2684 = vpop.xlane.xlu0 %2683
  %v2685 = vsel %vm579, %v2673, 0.0
  %2686 = vadd.xlane.f32.xlu0 %v2685
  %v2687 = vpop.xlane.xlu0 %2686
  %v2688 = vsel %vm579, %v2674, 0.0
  %2689 = vadd.xlane.f32.xlu0 %v2688
  %v2690 = vpop.xlane.xlu0 %2689
  %v2691 = vsel %vm579, %v2675, 0.0
  %2692 = vadd.xlane.f32.xlu0 %v2691
  %v2693 = vpop.xlane.xlu0 %2692
  %v2694 = vsel %vm579, %v2676, 0.0
  %2695 = vadd.xlane.f32.xlu0 %v2694
  %v2696 = vpop.xlane.xlu0 %2695
  %v2697 = vsel %vm579, %v2677, 0.0
  %2698 = vadd.xlane.f32.xlu0 %v2697
  %v2699 = vpop.xlane.xlu0 %2698
  %v2700 = vsel %vm579, %v2678, 0.0
  %2701 = vadd.xlane.f32.xlu0 %v2700
  %v2702 = vpop.xlane.xlu0 %2701
  %v2703 = vsel %vm579, %v2679, 0.0
  %2704 = vadd.xlane.f32.xlu0 %v2703
  %v2705 = vpop.xlane.xlu0 %2704
  %v2706 = vsel %vm579, %v2680, 0.0
  %2707 = vadd.xlane.f32.xlu0 %v2706
  %v2708 = vpop.xlane.xlu0 %2707
  %v2709 = vsel %vm579, %v2681, 0.0
  %2710 = vadd.xlane.f32.xlu0 %v2709
  %v2711 = vpop.xlane.xlu0 %2710
  %v2712 = vmax.f32 %v2684, 1e-24
  %v2713 = vmax.f32 %v2687, 1e-24
  %v2714 = vmax.f32 %v2690, 1e-24
  %v2715 = vmax.f32 %v2693, 1e-24
  %v2716 = vmax.f32 %v2696, 1e-24
  %v2717 = vmax.f32 %v2699, 1e-24
  %v2718 = vmax.f32 %v2702, 1e-24
  %v2719 = vmax.f32 %v2705, 1e-24
  %v2720 = vmax.f32 %v2708, 1e-24
  %v2721 = vmax.f32 %v2711, 1e-24
  %v2722 = vrsqrt.pop %v2712
  %v2723 = vmul.f32 %v2722, %v2712
  %v2724 = vmul.f32 %v2723, %v2722
  %v2725 = vmul.f32 0.5, %v2724
  %v2726 = vsub.f32 1.5, %v2725
  %v2727 = vmul.f32 %v2722, %v2726
  %vm2728 = vweird.f32 %v2712
  %vm2729 = vweird.f32 %v2722
  %vm2730 = vmor %vm2728, %vm2729
  %v2731 = vsel %vm2730, %v2722, %v2727
  %v2732 = vrsqrt.pop %v2713
  %v2733 = vmul.f32 %v2732, %v2713
  %v2734 = vmul.f32 %v2733, %v2732
  %v2735 = vmul.f32 0.5, %v2734
  %v2736 = vsub.f32 1.5, %v2735
  %v2737 = vmul.f32 %v2732, %v2736
  %vm2738 = vweird.f32 %v2713
  %vm2739 = vweird.f32 %v2732
  %vm2740 = vmor %vm2738, %vm2739
  %v2741 = vsel %vm2740, %v2732, %v2737
  %v2742 = vrsqrt.pop %v2714
  %v2743 = vmul.f32 %v2742, %v2714
  %v2744 = vmul.f32 %v2743, %v2742
  %v2745 = vmul.f32 0.5, %v2744
  %v2746 = vsub.f32 1.5, %v2745
  %v2747 = vmul.f32 %v2742, %v2746
  %vm2748 = vweird.f32 %v2714
  %vm2749 = vweird.f32 %v2742
  %vm2750 = vmor %vm2748, %vm2749
  %v2751 = vsel %vm2750, %v2742, %v2747
  %v2752 = vrsqrt.pop %v2715
  %v2753 = vmul.f32 %v2752, %v2715
  %v2754 = vmul.f32 %v2753, %v2752
  %v2755 = vmul.f32 0.5, %v2754
  %v2756 = vsub.f32 1.5, %v2755
  %v2757 = vmul.f32 %v2752, %v2756
  %vm2758 = vweird.f32 %v2715
  %vm2759 = vweird.f32 %v2752
  %vm2760 = vmor %vm2758, %vm2759
  %v2761 = vsel %vm2760, %v2752, %v2757
  %v2762 = vrsqrt.pop %v2716
  %v2763 = vmul.f32 %v2762, %v2716
  %v2764 = vmul.f32 %v2763, %v2762
  %v2765 = vmul.f32 0.5, %v2764
  %v2766 = vsub.f32 1.5, %v2765
  %v2767 = vmul.f32 %v2762, %v2766
  %vm2768 = vweird.f32 %v2716
  %vm2769 = vweird.f32 %v2762
  %vm2770 = vmor %vm2768, %vm2769
  %v2771 = vsel %vm2770, %v2762, %v2767
  %v2772 = vrsqrt.pop %v2717
  %v2773 = vmul.f32 %v2772, %v2717
  %v2774 = vmul.f32 %v2773, %v2772
  %v2775 = vmul.f32 0.5, %v2774
  %v2776 = vsub.f32 1.5, %v2775
  %v2777 = vmul.f32 %v2772, %v2776
  %vm2778 = vweird.f32 %v2717
  %vm2779 = vweird.f32 %v2772
  %vm2780 = vmor %vm2778, %vm2779
  %v2781 = vsel %vm2780, %v2772, %v2777
  %v2782 = vrsqrt.pop %v2718
  %v2783 = vmul.f32 %v2782, %v2718
  %v2784 = vmul.f32 %v2783, %v2782
  %v2785 = vmul.f32 0.5, %v2784
  %v2786 = vsub.f32 1.5, %v2785
  %v2787 = vmul.f32 %v2782, %v2786
  %vm2788 = vweird.f32 %v2718
  %vm2789 = vweird.f32 %v2782
  %vm2790 = vmor %vm2788, %vm2789
  %v2791 = vsel %vm2790, %v2782, %v2787
  %v2792 = vrsqrt.pop %v2719
  %v2793 = vmul.f32 %v2792, %v2719
  %v2794 = vmul.f32 %v2793, %v2792
  %v2795 = vmul.f32 0.5, %v2794
  %v2796 = vsub.f32 1.5, %v2795
  %v2797 = vmul.f32 %v2792, %v2796
  %vm2798 = vweird.f32 %v2719
  %vm2799 = vweird.f32 %v2792
  %vm2800 = vmor %vm2798, %vm2799
  %v2801 = vsel %vm2800, %v2792, %v2797
  %v2802 = vrsqrt.pop %v2720
  %v2803 = vmul.f32 %v2802, %v2720
  %v2804 = vmul.f32 %v2803, %v2802
  %v2805 = vmul.f32 0.5, %v2804
  %v2806 = vsub.f32 1.5, %v2805
  %v2807 = vmul.f32 %v2802, %v2806
  %vm2808 = vweird.f32 %v2720
  %vm2809 = vweird.f32 %v2802
  %vm2810 = vmor %vm2808, %vm2809
  %v2811 = vsel %vm2810, %v2802, %v2807
  %v2812 = vrsqrt.pop %v2721
  %v2813 = vmul.f32 %v2812, %v2721
  %v2814 = vmul.f32 %v2813, %v2812
  %v2815 = vmul.f32 0.5, %v2814
  %v2816 = vsub.f32 1.5, %v2815
  %v2817 = vmul.f32 %v2812, %v2816
  %vm2818 = vweird.f32 %v2721
  %vm2819 = vweird.f32 %v2812
  %vm2820 = vmor %vm2818, %vm2819
  %v2821 = vsel %vm2820, %v2812, %v2817
  %v2822 = vmul.f32 %v2662, %v2731
  %v2823 = vmul.f32 %v2663, %v2741
  %v2824 = vmul.f32 %v2664, %v2751
  %v2825 = vmul.f32 %v2665, %v2761
  %v2826 = vmul.f32 %v2666, %v2771
  %v2827 = vmul.f32 %v2667, %v2781
  %v2828 = vmul.f32 %v2668, %v2791
  %v2829 = vmul.f32 %v2669, %v2801
  %v2830 = vmul.f32 %v2670, %v2811
  %v2831 = vmul.f32 %v2671, %v2821
  %v2832 = vpack.c.bf16 %v2822, %v2822
  %v2833 = vpack.c.bf16 %v2823, %v2823
  %v2834 = vpack.c.bf16 %v2824, %v2824
  %v2835 = vpack.c.bf16 %v2825, %v2825
  %v2836 = vpack.c.bf16 %v2826, %v2826
  %v2837 = vpack.c.bf16 %v2827, %v2827
  %v2838 = vpack.c.bf16 %v2828, %v2828
  %v2839 = vpack.c.bf16 %v2829, %v2829
  %v2840 = vpack.c.bf16 %v2830, %v2830
  %v2841 = vpack.c.bf16 %v2831, %v2831
  %v2844 = vunpack.c.l.b16 %v2832
  %v2845 = vunpack.c.l.b16 %v2833
  %v2846 = vpack.c.b16 %v2845, %v2844
  %v2849 = vunpack.c.l.b16 %v2834
  %v2850 = vunpack.c.l.b16 %v2835
  %v2851 = vpack.c.b16 %v2850, %v2849
  %2852 = vrot.lane.b32.xlu0 %v2851, 32
  %v2853 = vpop.permute.xlu0 %2852
  %v2856 = vunpack.c.l.b16 %v2836
  %v2857 = vunpack.c.l.b16 %v2837
  %v2858 = vpack.c.b16 %v2857, %v2856
  %2859 = vrot.lane.b32.xlu0 %v2858, 64
  %v2860 = vpop.permute.xlu0 %2859
  %v2863 = vunpack.c.l.b16 %v2838
  %v2864 = vunpack.c.l.b16 %v2839
  %v2865 = vpack.c.b16 %v2864, %v2863
  %2866 = vrot.lane.b32.xlu0 %v2865, 96
  %v2867 = vpop.permute.xlu0 %2866
  %v2870 = vunpack.c.l.b16 %v2840
  %v2871 = vunpack.c.l.b16 %v2841
  %v2872 = vpack.c.b16 %v2871, %v2870
  %v2875 = vsel %vm579, %v2846, %v2853
  %v2877 = vsel %vm2159, %v2875, %v2860
  %vm2878 = vcmask 785408
  %v2880 = vsel %vm2878, %v2877, %v2867
  %v2882 = vld [vmem:[%s7] sm:$0xf]
  %v2883 = vld [vmem:[%s7 + $0x4] sm:$0xf]
  %v2884 = vld [vmem:[%s7 + $0x8] sm:$0xf]
  %v2885 = vld [vmem:[%s7 + $0xc] sm:$0xf]
  %v2886 = vld [vmem:[%s7 + $0x10] sm:$0xf]
  %v2887 = vld [vmem:[%s7 + $0x14] sm:$0xf]
  %v2888 = vld [vmem:[%s7 + $0x18] sm:$0xf]
  %v2889 = vld [vmem:[%s7 + $0x1c] sm:$0xf]
  %v2890 = vld [vmem:[%s7 + $0x20] sm:$0xf]
  %v2891 = vld [vmem:[%s7 + $0x24] sm:$0xf]
  %v2892 = vld [vmem:[%s7 + $0x28] sm:$0xf]
  %v2893 = vld [vmem:[%s7 + $0x2c] sm:$0xf]
  %v2894 = vld [vmem:[%s7 + $0x30] sm:$0xf]
  %v2895 = vld [vmem:[%s7 + $0x34] sm:$0xf]
  %v2896 = vld [vmem:[%s7 + $0x38] sm:$0xf]
  %v2897 = vld [vmem:[%s7 + $0x3c] sm:$0xf]
  %v2898 = vld [vmem:[%s7 + $0x40] sm:$0xf]
  %v2899 = vld [vmem:[%s7 + $0x44] sm:$0xf]
  %v2900 = vld [vmem:[%s7 + $0x48] sm:$0xf]
  %v2901 = vld [vmem:[%s7 + $0x4c] sm:$0xf]
  %v2902 = vld [vmem:[%s8] sm:$0x1]
  %v2904 = vperm.slane %v2902, 0
  %v2926 = vunpack.c.l.b16 %v2882
  %v2927 = vunpack.c.l.b16 %v2883
  %v2928 = vunpack.c.l.b16 %v2884
  %v2929 = vunpack.c.l.b16 %v2885
  %v2930 = vunpack.c.l.b16 %v2886
  %v2931 = vunpack.c.l.b16 %v2887
  %v2932 = vunpack.c.l.b16 %v2888
  %v2933 = vunpack.c.l.b16 %v2889
  %v2934 = vunpack.c.l.b16 %v2890
  %v2935 = vunpack.c.l.b16 %v2891
  %v2936 = vunpack.c.l.b16 %v2892
  %v2937 = vunpack.c.l.b16 %v2893
  %v2938 = vunpack.c.l.b16 %v2894
  %v2939 = vunpack.c.l.b16 %v2895
  %v2940 = vunpack.c.l.b16 %v2896
  %v2941 = vunpack.c.l.b16 %v2897
  %v2942 = vunpack.c.l.b16 %v2898
  %v2943 = vunpack.c.l.b16 %v2899
  %v2944 = vunpack.c.l.b16 %v2900
  %v2945 = vunpack.c.l.b16 %v2901
  %v2946 = vpack.c.b16 %v2927, %v2926
  %v2947 = vpack.c.b16 %v2929, %v2928
  %v2948 = vpack.c.b16 %v2931, %v2930
  %v2949 = vpack.c.b16 %v2933, %v2932
  %v2950 = vpack.c.b16 %v2935, %v2934
  %v2951 = vpack.c.b16 %v2937, %v2936
  %v2952 = vpack.c.b16 %v2939, %v2938
  %v2953 = vpack.c.b16 %v2941, %v2940
  %v2954 = vpack.c.b16 %v2943, %v2942
  %v2955 = vpack.c.b16 %v2945, %v2944
  %v2967 = vsel %vm579, %v2872, 0
  %2969 = vmatpush.bf16.msra.mxu0 %v2953
  %2970 = vmatpush.bf16.msra.mxu0 %v2952
  %2971 = vmatpush.bf16.msra.mxu0 %v2951
  %2972 = vmatpush.bf16.msra.mxu0 %v2950
  %2973 = vmatpush.bf16.msra.mxu0 %v2949
  %2974 = vmatpush.bf16.msra.mxu0 %v2948
  %2975 = vmatpush.bf16.msra.mxu0 %v2947
  %2976 = vmatpush.bf16.msra.mxu0 %v2946
  %2977 = vmatmul.bf16.gmra.mxu0 %v2880
  %v2978 = vpop.f32.mrf.mxu0
  %v2979 = vadd.f32 %v2904, %v2978
  %v2980 = vpop.f32.mrf.mxu0
  %v2981 = vadd.f32 %v2904, %v2980
  %2982 = vdwg.mxu0
  %2983 = vmatpush.bf16.msra.mxu0 0
  %2984 = vmatpush.bf16.msra.mxu0 0
  %2985 = vmatpush.bf16.msra.mxu0 0
  %2986 = vmatpush.bf16.msra.mxu0 0
  %2987 = vmatpush.bf16.msra.mxu0 0
  %2988 = vmatpush.bf16.msra.mxu0 0
  %2989 = vmatpush.bf16.msra.mxu0 %v2955
  %2990 = vmatpush.bf16.msra.mxu0 %v2954
  %2991 = vmatmul.bf16.gmra.mxu0 %v2967
  %v2992 = vpop.f32.mrf.mxu0
  %v2993 = vadd.f32 %v2979, %v2992
  %v2994 = vpop.f32.mrf.mxu0
  %v2995 = vadd.f32 %v2981, %v2994
  %2996 = vdwg.mxu0
  %v2997 = vmin.f32 %v2993, 0.0
  %v2998 = vmin.f32 %v2995, 0.0
  %vm2999 = vcmp.gt.f32.partialorder %v2993, 0.0
  %vm3000 = vcmp.gt.f32.partialorder %v2995, 0.0
  %v3001 = vmul.f32 %v2997, 1.442695
  %v3002 = vpow.pop %v3001
  %v3003 = vmul.f32 %v2998, 1.442695
  %v3004 = vpow.pop %v3003
  %v3005 = vsub.f32 %v3002, 1.0
  %v3006 = vsub.f32 %v3004, 1.0
  %v3007 = vmul.f32 %v3005, 1.6732632
  %v3008 = vmul.f32 %v3006, 1.6732632
  %v3009 = vsel %vm2999, %v2993, %v3007
  %v3010 = vsel %vm3000, %v2995, %v3008
  %v3011 = vmul.f32 %v3009, 1.050701
  %v3012 = vmul.f32 %v3010, 1.050701
  %v3013 = vpack.c.bf16 %v3012, %v3011
  %v3014 = vld [vmem:[%s9] sm:$0xf]
  %v3015 = vld [vmem:[%s9 + $0x4] sm:$0xf]
  %v3016 = vld [vmem:[%s9 + $0x8] sm:$0xf]
  %v3017 = vld [vmem:[%s9 + $0xc] sm:$0xf]
  %v3018 = vld [vmem:[%s9 + $0x10] sm:$0xf]
  %v3019 = vld [vmem:[%s9 + $0x14] sm:$0xf]
  %v3020 = vld [vmem:[%s9 + $0x18] sm:$0xf]
  %v3021 = vld [vmem:[%s9 + $0x1c] sm:$0xf]
  %v3022 = vld [vmem:[%s10] sm:$0x1]
  %v3024 = vperm.slane %v3022, 0
  %v3034 = vunpack.c.l.b16 %v3014
  %v3035 = vunpack.c.l.b16 %v3015
  %v3036 = vunpack.c.l.b16 %v3016
  %v3037 = vunpack.c.l.b16 %v3017
  %v3038 = vunpack.c.l.b16 %v3018
  %v3039 = vunpack.c.l.b16 %v3019
  %v3040 = vunpack.c.l.b16 %v3020
  %v3041 = vunpack.c.l.b16 %v3021
  %v3042 = vpack.c.b16 %v3035, %v3034
  %v3043 = vpack.c.b16 %v3037, %v3036
  %v3044 = vpack.c.b16 %v3039, %v3038
  %v3045 = vpack.c.b16 %v3041, %v3040
  %v3051 = vsel %vm2159, %v3013, 0
  %3053 = vmatpush.bf16.msra.mxu0 0
  %3054 = vmatpush.bf16.msra.mxu0 0
  %3055 = vmatpush.bf16.msra.mxu0 0
  %3056 = vmatpush.bf16.msra.mxu0 0
  %3057 = vmatpush.bf16.msra.mxu0 %v3045
  %3058 = vmatpush.bf16.msra.mxu0 %v3044
  %3059 = vmatpush.bf16.msra.mxu0 %v3043
  %3060 = vmatpush.bf16.msra.mxu0 %v3042
  %3061 = vmatmul.bf16.gmra.mxu0 %v3051
  %v3062 = vpop.f32.mrf.mxu0
  %v3063 = vadd.f32 %v3024, %v3062
  %v3064 = vpop.f32.mrf.mxu0
  %v3065 = vadd.f32 %v3024, %v3064
  %3066 = vdwg.mxu0
  %v3067 = vmin.f32 %v3063, 0.0
  %v3068 = vmin.f32 %v3065, 0.0
  %vm3069 = vcmp.gt.f32.partialorder %v3063, 0.0
  %vm3070 = vcmp.gt.f32.partialorder %v3065, 0.0
  %v3071 = vmul.f32 %v3067, 1.442695
  %v3072 = vpow.pop %v3071
  %v3073 = vmul.f32 %v3068, 1.442695
  %v3074 = vpow.pop %v3073
  %v3075 = vsub.f32 %v3072, 1.0
  %v3076 = vsub.f32 %v3074, 1.0
  %v3077 = vmul.f32 %v3075, 1.6732632
  %v3078 = vmul.f32 %v3076, 1.6732632
  %v3079 = vsel %vm3069, %v3063, %v3077
  %v3080 = vsel %vm3070, %v3065, %v3078
  %v3081 = vmul.f32 %v3079, 1.050701
  %v3082 = vmul.f32 %v3080, 1.050701
  %v3083 = vpack.c.bf16 %v3082, %v3081
  %v3084 = vld [vmem:[%s11] sm:$0xf]
  %v3085 = vld [vmem:[%s11 + $0x4] sm:$0xf]
  %v3086 = vld [vmem:[%s11 + $0x8] sm:$0xf]
  %v3087 = vld [vmem:[%s11 + $0xc] sm:$0xf]
  %v3088 = vld [vmem:[%s12] sm:$0x1]
  %v3090 = vperm.slane %v3088, 0
  %v3096 = vunpack.c.l.b16 %v3084
  %v3097 = vunpack.c.l.b16 %v3085
  %v3098 = vunpack.c.l.b16 %v3086
  %v3099 = vunpack.c.l.b16 %v3087
  %v3100 = vpack.c.b16 %v3097, %v3096
  %v3101 = vpack.c.b16 %v3099, %v3098
  %v3105 = vsel %vm579, %v3083, 0
  %3107 = vmatpush.bf16.msra.mxu0 0
  %3108 = vmatpush.bf16.msra.mxu0 0
  %3109 = vmatpush.bf16.msra.mxu0 0
  %3110 = vmatpush.bf16.msra.mxu0 0
  %3111 = vmatpush.bf16.msra.mxu0 0
  %3112 = vmatpush.bf16.msra.mxu0 0
  %3113 = vmatpush.bf16.msra.mxu0 %v3101
  %3114 = vmatpush.bf16.msra.mxu0 %v3100
  %3115 = vmatmul.bf16.gmra.mxu0 %v3105
  %v3116 = vpop.f32.mrf.mxu0
  %v3117 = vadd.f32 %v3090, %v3116
  %v3118 = vpop.f32.mrf.mxu0
  %v3119 = vadd.f32 %v3090, %v3118
  %3120 = vdwg.mxu0
  %vm3121 = vcmask 23552
  %3122 = vst.msk [vmem:[%s13] sm:$0xff] %vm3121, %v3117
  %3123 = vst.msk [vmem:[%s13 + $0x8] sm:$0xff] %vm3121, %v3119
  // Predicated region
  $region54: #{classifier_forward.1} parent=0 // pred_check
    _
  $region55: #{classifier_forward.1} parent=0 // pred_check_branch
    %3125 = sbr.rel (0) target = $region57
  $region56: #{classifier_forward.1} parent=0 // pred_region
    _
  $region57: #{classifier_forward.1} parent=0 // pred_fallthru
    _
  // Predicated region
  $region58: #{classifier_forward.1} parent=0 // pred_check
    _
  $region59: #{classifier_forward.1} parent=0 // pred_check_branch
    %3127 = sbr.rel (0) target = $region61
  $region60: #{classifier_forward.1} parent=0 // pred_region
    _
  $region61: #{classifier_forward.1} parent=0 // pred_fallthru
    _

</llo_original>
